<compile_context>
chip_gen: v6e
topology: v6e:2x2x1
jax: 0.10.0
libtpu: 0.0.40
codegen_flags: <defaults>
</compile_context>

<pallas_src>
import functools

import numpy as np
import jax
import jax.numpy as jnp
from jax.experimental import pallas as pl
from jax.experimental.pallas import tpu as pltpu

Z_SIZE = 8
BATCH = 8


# ------------------------------ kernel --------------------------------------
def _sylvester_kernel(zk_ref, r1_ref, r2_ref, b_ref, out_ref, *, z_size,
                      permute_reverse):
    zk = zk_ref[...]            # (B, Z)  original (unpermuted) z
    r1 = r1_ref[...]            # (B, Z, Z)
    r2 = r2_ref[...]            # (B, Z, Z)
    b = b_ref[...]              # (B, Z)

    batch = zk.shape[0]
    z = z_size

    # Diagonals of r1/r2 extracted in-kernel (no jnp.diagonal HLO in wrapper):
    # d[n, i] = sum_j r[n, i, j] * (i == j)   -> VPU mask-multiply + XLU reduce.
    row = jax.lax.broadcasted_iota(jnp.int32, (z, z), 0)
    col = jax.lax.broadcasted_iota(jnp.int32, (z, z), 1)
    eye = (row == col).astype(jnp.float32)                        # (Z, Z)
    d1 = jnp.sum(r1 * eye[None, :, :], axis=-1)                   # (B, Z) diag(r1)
    d2 = jnp.sum(r2 * eye[None, :, :], axis=-1)                   # (B, Z) diag(r2)

    if permute_reverse:
        # Reversal permutation folded into the (B, Z) vectors (not matrices):
        # rev(x)[n, i] = sum_j x[n, j] * flip[i, j],  flip[i, j] = (i + j == Z-1).
        flip = (row + col == z - 1).astype(jnp.float32)           # (Z, Z), symmetric
        zk_per = jnp.sum(zk[:, None, :] * flip[None, :, :], axis=-1)
    else:
        zk_per = zk

    # r2qzb[n, j] = sum_i zk_per[n, i] * r2[n, j, i] + b[n, j]
    # VPU broadcast-multiply + XLU lane reduction; shapes far too small for MXU.
    r2qzb = jnp.sum(zk_per[:, None, :] * r2, axis=-1) + b         # (B, Z)
    h = jnp.tanh(r2qzb)

    # z_mid[n, j] = sum_i h[n, i] * r1[n, j, i]
    z_mid = jnp.sum(h[:, None, :] * r1, axis=-1)                  # (B, Z)
    if permute_reverse:
        z_mid = jnp.sum(z_mid[:, None, :] * flip[None, :, :], axis=-1)
    z_new = z_mid + zk

    # Jacobian diagonal: der_tanh(r2qzb) * diag(r1) * diag(r2) + 1
    diag_j = (1.0 - h * h) * d1 * d2 + 1.0
    log_diag_j = jnp.log(jnp.abs(diag_j))                         # (B, Z)
    log_det = jnp.sum(log_diag_j, axis=-1, keepdims=True)         # (B, 1)

    # Direct sliced stores into the lane-dense output slab (no concat/zero-pad;
    # lanes >= 3*Z are left undefined and are never read by the wrapper).
    out_ref[:, :z] = z_new
    out_ref[:, z:2 * z] = log_diag_j
    out_ref[:, 2 * z:3 * z] = jnp.broadcast_to(log_det, (batch, z))


# ------------------------------ wrapper -------------------------------------
@functools.partial(jax.jit, static_argnames=("permute_reverse", "sum_ldj"))
def triangular_sylvester_forward(zk, r1, r2, b, permute_reverse=False, sum_ldj=True):
    """zk: (B, Z); r1, r2: (B, Z, Z); b: (B, 1, Z).

    permute_reverse=True corresponds to permute_z = [Z-1, ..., 0] (Q = P),
    permute_reverse=False corresponds to permute_z = None (Q = I).
    """
    zk = jnp.asarray(zk, jnp.float32)
    r1 = jnp.asarray(r1, jnp.float32)
    r2 = jnp.asarray(r2, jnp.float32)
    b = jnp.asarray(b, jnp.float32)
    B, Z = zk.shape

    # (B,1,Z) -> (B,Z): contiguous reshape == bitcast; no HBM round trip.
    b2 = jnp.reshape(b, (B, Z))

    out_width = pl.cdiv(3 * Z, 128) * 128                         # lane-dense slab
    vmem = pl.BlockSpec(memory_space=pltpu.MemorySpace.VMEM)

    out = pl.pallas_call(
        functools.partial(_sylvester_kernel, z_size=Z,
                          permute_reverse=permute_reverse),
        out_shape=jax.ShapeDtypeStruct((B, out_width), jnp.float32),
        in_specs=[vmem, vmem, vmem, vmem],
        out_specs=vmem,
    )(zk, r1, r2, b2)

    z_new = out[:, :Z]
    if sum_ldj:
        return z_new, out[:, 2 * Z]           # summed log-det, (B,)
    return z_new, out[:, Z:2 * Z]             # per-dimension log|diag_j|


# ----------------------- plain-JAX reference (check) ------------------------
def sylvester_reference(zk, r1, r2, b, permute_reverse=False, sum_ldj=True):
    diag_r1 = jnp.diagonal(r1, axis1=1, axis2=2)
    diag_r2 = jnp.diagonal(r2, axis1=1, axis2=2)
    zk_ = zk[:, None, :]
    z_per = zk_[:, :, ::-1] if permute_reverse else zk_
    r2qzb = jnp.einsum('bij,bkj->bik', z_per, r2) + b             # bmm(z_per, r2^T)
    z = jnp.einsum('bij,bkj->bik', jnp.tanh(r2qzb), r1)           # bmm(tanh(.), r1^T)
    if permute_reverse:
        z = z[:, :, ::-1]
    z = (z + zk_)[:, 0, :]
    diag_j = (1.0 - jnp.tanh(r2qzb[:, 0, :]) ** 2) * diag_r1 * diag_r2 + 1.0
    log_diag_j = jnp.log(jnp.abs(diag_j))
    if sum_ldj:
        return z, jnp.sum(log_diag_j, axis=-1)
    return z, log_diag_j


# ------------------------------- main ----------------------------------------
if __name__ == "__main__":
    key = jax.random.PRNGKey(0)
    k0, k1, k2, k3 = jax.random.split(key, 4)

    zk = jax.random.normal(k0, (BATCH, Z_SIZE), jnp.float32)
    r1 = jnp.triu(0.2 * jax.random.normal(k1, (BATCH, Z_SIZE, Z_SIZE), jnp.float32))
    r2 = jnp.triu(0.2 * jax.random.normal(k2, (BATCH, Z_SIZE, Z_SIZE), jnp.float32))
    b = 0.1 * jax.random.normal(k3, (BATCH, 1, Z_SIZE), jnp.float32)

    for permute_reverse in (True, False):
        z_out, ldj = triangular_sylvester_forward(
            zk, r1, r2, b, permute_reverse=permute_reverse, sum_ldj=True)
        jax.block_until_ready((z_out, ldj))

        z_ref, ldj_ref = sylvester_reference(
            zk, r1, r2, b, permute_reverse=permute_reverse, sum_ldj=True)
        np.testing.assert_allclose(np.asarray(z_out), np.asarray(z_ref),
                                   rtol=1e-5, atol=1e-5)
        np.testing.assert_allclose(np.asarray(ldj), np.asarray(ldj_ref),
                                   rtol=1e-5, atol=1e-5)

        # sum_ldj=False path
        z_out2, ldj_dim = triangular_sylvester_forward(
            zk, r1, r2, b, permute_reverse=permute_reverse, sum_ldj=False)
        jax.block_until_ready((z_out2, ldj_dim))
        _, ldj_dim_ref = sylvester_reference(
            zk, r1, r2, b, permute_reverse=permute_reverse, sum_ldj=False)
        np.testing.assert_allclose(np.asarray(ldj_dim), np.asarray(ldj_dim_ref),
                                   rtol=1e-5, atol=1e-5)

    print("KERNEL_OK")
</pallas_src>

<mosaic_0001>
module attributes {stable_mosaic.version = 11 : i64} {
  func.func @_sylvester_kernel(%arg0: memref<8x8xf32, #tpu.memory_space<vmem>>, %arg1: memref<8x8x8xf32, #tpu.memory_space<vmem>>, %arg2: memref<8x8x8xf32, #tpu.memory_space<vmem>>, %arg3: memref<8x8xf32, #tpu.memory_space<vmem>>, %arg4: memref<8x128xf32, #tpu.memory_space<vmem>>) attributes {dimension_semantics = [], scalar_prefetch = 0 : i64, scratch_operands = 0 : i64, tpu.core_type = #tpu.core_type<tc>} {
    %c0 = arith.constant 0 : index
    %c0_0 = arith.constant 0 : index
    %0 = vector.load %arg0[%c0, %c0_0] : memref<8x8xf32, #tpu.memory_space<vmem>>, vector<8x8xf32>
    %c0_1 = arith.constant 0 : index
    %c0_2 = arith.constant 0 : index
    %c0_3 = arith.constant 0 : index
    %1 = vector.load %arg1[%c0_1, %c0_2, %c0_3] : memref<8x8x8xf32, #tpu.memory_space<vmem>>, vector<8x8x8xf32>
    %c0_4 = arith.constant 0 : index
    %c0_5 = arith.constant 0 : index
    %c0_6 = arith.constant 0 : index
    %2 = vector.load %arg2[%c0_4, %c0_5, %c0_6] : memref<8x8x8xf32, #tpu.memory_space<vmem>>, vector<8x8x8xf32>
    %c0_7 = arith.constant 0 : index
    %c0_8 = arith.constant 0 : index
    %3 = vector.load %arg3[%c0_7, %c0_8] : memref<8x8xf32, #tpu.memory_space<vmem>>, vector<8x8xf32>
    %4 = tpu.iota {dimensions = array<i32: 0>} : vector<8x8xi32>
    %5 = tpu.iota {dimensions = array<i32: 1>} : vector<8x8xi32>
    %6 = arith.cmpi eq, %4, %5 : vector<8x8xi32>
    %7 = arith.extui %6 : vector<8x8xi1> to vector<8x8xi32>
    %8 = arith.sitofp %7 : vector<8x8xi32> to vector<8x8xf32>
    %9 = vector.shape_cast %8 : vector<8x8xf32> to vector<1x8x8xf32>
    %10 = vector.broadcast %9 : vector<1x8x8xf32> to vector<8x8x8xf32>
    %11 = arith.mulf %1, %10 : vector<8x8x8xf32>
    %cst = arith.constant dense<0.000000e+00> : vector<8x8xf32>
    %12 = vector.multi_reduction <add>, %11, %cst [2] : vector<8x8x8xf32> to vector<8x8xf32>
    %13 = vector.shape_cast %8 : vector<8x8xf32> to vector<1x8x8xf32>
    %14 = vector.broadcast %13 : vector<1x8x8xf32> to vector<8x8x8xf32>
    %15 = arith.mulf %2, %14 : vector<8x8x8xf32>
    %cst_9 = arith.constant dense<0.000000e+00> : vector<8x8xf32>
    %16 = vector.multi_reduction <add>, %15, %cst_9 [2] : vector<8x8x8xf32> to vector<8x8xf32>
    %17 = arith.addi %4, %5 : vector<8x8xi32>
    %c7_i32 = arith.constant 7 : i32
    %18 = vector.broadcast %c7_i32 : i32 to vector<8x8xi32>
    %19 = arith.cmpi eq, %17, %18 : vector<8x8xi32>
    %20 = arith.extui %19 : vector<8x8xi1> to vector<8x8xi32>
    %21 = arith.sitofp %20 : vector<8x8xi32> to vector<8x8xf32>
    %22 = vector.shape_cast %0 : vector<8x8xf32> to vector<8x1x8xf32>
    %23 = vector.shape_cast %21 : vector<8x8xf32> to vector<1x8x8xf32>
    %24 = vector.broadcast %22 : vector<8x1x8xf32> to vector<8x8x8xf32>
    %25 = vector.broadcast %23 : vector<1x8x8xf32> to vector<8x8x8xf32>
    %26 = arith.mulf %24, %25 : vector<8x8x8xf32>
    %cst_10 = arith.constant dense<0.000000e+00> : vector<8x8xf32>
    %27 = vector.multi_reduction <add>, %26, %cst_10 [2] : vector<8x8x8xf32> to vector<8x8xf32>
    %28 = vector.shape_cast %27 : vector<8x8xf32> to vector<8x1x8xf32>
    %29 = vector.broadcast %28 : vector<8x1x8xf32> to vector<8x8x8xf32>
    %30 = arith.mulf %29, %2 : vector<8x8x8xf32>
    %cst_11 = arith.constant dense<0.000000e+00> : vector<8x8xf32>
    %31 = vector.multi_reduction <add>, %30, %cst_11 [2] : vector<8x8x8xf32> to vector<8x8xf32>
    %32 = arith.addf %31, %3 : vector<8x8xf32>
    %33 = math.tanh %32 : vector<8x8xf32>
    %34 = vector.shape_cast %33 : vector<8x8xf32> to vector<8x1x8xf32>
    %35 = vector.broadcast %34 : vector<8x1x8xf32> to vector<8x8x8xf32>
    %36 = arith.mulf %35, %1 : vector<8x8x8xf32>
    %cst_12 = arith.constant dense<0.000000e+00> : vector<8x8xf32>
    %37 = vector.multi_reduction <add>, %36, %cst_12 [2] : vector<8x8x8xf32> to vector<8x8xf32>
    %38 = vector.shape_cast %37 : vector<8x8xf32> to vector<8x1x8xf32>
    %39 = vector.shape_cast %21 : vector<8x8xf32> to vector<1x8x8xf32>
    %40 = vector.broadcast %38 : vector<8x1x8xf32> to vector<8x8x8xf32>
    %41 = vector.broadcast %39 : vector<1x8x8xf32> to vector<8x8x8xf32>
    %42 = arith.mulf %40, %41 : vector<8x8x8xf32>
    %cst_13 = arith.constant dense<0.000000e+00> : vector<8x8xf32>
    %43 = vector.multi_reduction <add>, %42, %cst_13 [2] : vector<8x8x8xf32> to vector<8x8xf32>
    %44 = arith.addf %43, %0 : vector<8x8xf32>
    %45 = arith.mulf %33, %33 : vector<8x8xf32>
    %cst_14 = arith.constant 1.000000e+00 : f32
    %46 = vector.broadcast %cst_14 : f32 to vector<8x8xf32>
    %47 = arith.subf %46, %45 : vector<8x8xf32>
    %48 = arith.mulf %47, %12 : vector<8x8xf32>
    %49 = arith.mulf %48, %16 : vector<8x8xf32>
    %cst_15 = arith.constant 1.000000e+00 : f32
    %50 = vector.broadcast %cst_15 : f32 to vector<8x8xf32>
    %51 = arith.addf %49, %50 : vector<8x8xf32>
    %52 = math.absf %51 : vector<8x8xf32>
    %53 = math.log %52 : vector<8x8xf32>
    %cst_16 = arith.constant dense<0.000000e+00> : vector<8xf32>
    %54 = vector.multi_reduction <add>, %53, %cst_16 [1] : vector<8x8xf32> to vector<8xf32>
    %55 = vector.shape_cast %54 : vector<8xf32> to vector<8x1xf32>
    %c0_17 = arith.constant 0 : index
    %c0_18 = arith.constant 0 : index
    %56 = vector.load %arg4[%c0_17, %c0_18] : memref<8x128xf32, #tpu.memory_space<vmem>>, vector<8x8xf32>
    tpu.vector_store %arg4[%c0_17, %c0_18], %44 {strides = array<i32>} : memref<8x128xf32, #tpu.memory_space<vmem>>, vector<8x8xf32>,
    %c0_19 = arith.constant 0 : index
    %c8 = arith.constant 8 : index
    %57 = vector.load %arg4[%c0_19, %c8] : memref<8x128xf32, #tpu.memory_space<vmem>>, vector<8x8xf32>
    tpu.vector_store %arg4[%c0_19, %c8], %53 {strides = array<i32>} : memref<8x128xf32, #tpu.memory_space<vmem>>, vector<8x8xf32>,
    %58 = vector.shape_cast %55 : vector<8x1xf32> to vector<8x1xf32>
    %59 = vector.broadcast %58 : vector<8x1xf32> to vector<8x8xf32>
    %c0_20 = arith.constant 0 : index
    %c16 = arith.constant 16 : index
    %60 = vector.load %arg4[%c0_20, %c16] : memref<8x128xf32, #tpu.memory_space<vmem>>, vector<8x8xf32>
    tpu.vector_store %arg4[%c0_20, %c16], %59 {strides = array<i32>} : memref<8x128xf32, #tpu.memory_space<vmem>>, vector<8x8xf32>,
    return
  }
}

</mosaic_0001>

<llo_original>
// kernel: triangular_sylvester_forward.1
$region0: #{triangular_sylvester_forward.1}
  #allocation0 [shape = 'u32[]', space=smem, size = 0x4, offset = 0x4, fixed_abs, tag = 'smem constant byte address 0x4 - core index']
  #allocation1 [shape = 'u32[144,128]{1,0:T(1,128)}', space=vmem, size = 0x12000, scoped, tag = 'internal scratch']
  %s0 = inlined_call_operand.hbm [shape: f32[8,8], index: 0, kind: input, shape index: {}]
  %s1 = inlined_call_operand.hbm [shape: f32[8,8,8], index: 1, kind: input, shape index: {}]
  %s2 = inlined_call_operand.hbm [shape: f32[8,8,8], index: 2, kind: input, shape index: {}]
  %s3 = inlined_call_operand.hbm [shape: f32[8,8], index: 3, kind: input, shape index: {}]
  %s4 = inlined_call_operand.vmem [shape: f32[8,128], index: 4, kind: output, shape index: {}]
  %s5 = sld [smem:[#allocation0]]
  $region42: #{triangular_sylvester_forward.1} parent=0
    _
  %s7 = ssub.s32 1, %s5
  %s8 = scalar_select 0, %s7, %s5
  $region1: #{triangular_sylvester_forward.1} parent=0
    #allocation2 [shape = 'u8[4096]{0}', space=vmem, size = 0x1000, scoped, tag = 'input window, operand 0, single buffered']
    #allocation3 [shape = 's32[1]{0}', space=sflag, size = 0x4, scoped, tag = 'scoped memory for triangular_sylvester_forward.1']
    #allocation4 [shape = 'u8[32768]{0}', space=vmem, size = 0x8000, scoped, tag = 'input window, operand 1, single buffered']
    #allocation5 [shape = 's32[1]{0}', space=sflag, size = 0x4, scoped, tag = 'scoped memory for triangular_sylvester_forward.1']
    #allocation6 [shape = 'u8[32768]{0}', space=vmem, size = 0x8000, scoped, tag = 'input window, operand 2, single buffered']
    #allocation7 [shape = 'u8[4096]{0}', space=vmem, size = 0x1000, scoped, tag = 'input window, operand 3, single buffered']
    #allocation8 [shape = 's32[1]{0}', space=sflag, size = 0x4, scoped, tag = 'scoped memory for triangular_sylvester_forward.1']
    %9 = vsyncpa [#allocation3], 0
    %10 = vsyncpa [#allocation5], 0
    %11 = vsyncpa [#allocation8], 0
    // Predicated region
    $region2: #{triangular_sylvester_forward.1} parent=1 // pred_check
      _
    $region3: #{triangular_sylvester_forward.1} parent=1 // pred_check_branch
      %13 = sbr.rel (0) target = $region5
    $region4: #{triangular_sylvester_forward.1} parent=1 // pred_region
      %s15 = ssub.s32 128, 128
      %16 = vsyncadd [#allocation3], %s15
      %s18 = sshll.u32 [#allocation2], 4
      %s19 = int_to_ptr.vmem [resolvable:$true] %s18
      %21 = dma.hbm_to_vmem [thread:$0]  %s0, 128, %s19, [#allocation3]
    $region5: #{triangular_sylvester_forward.1} parent=1 // pred_fallthru
      _
    // Predicated region
    $region6: #{triangular_sylvester_forward.1} parent=1 // pred_check
      _
    $region7: #{triangular_sylvester_forward.1} parent=1 // pred_check_branch
      %23 = sbr.rel (0) target = $region9
    $region8: #{triangular_sylvester_forward.1} parent=1 // pred_region
      %s25 = ssub.s32 1024, 1024
      %26 = vsyncadd [#allocation5], %s25
      %s27 = sshll.u32 [#allocation4], 4
      %s28 = int_to_ptr.vmem [resolvable:$true] %s27
      %33 = dma.hbm_to_vmem [thread:$0]  %s1, 1024, %s28, [#allocation5], 128, 128, 8
    $region9: #{triangular_sylvester_forward.1} parent=1 // pred_fallthru
      _
    // Predicated region
    $region10: #{triangular_sylvester_forward.1} parent=1 // pred_check
      _
    $region11: #{triangular_sylvester_forward.1} parent=1 // pred_check_branch
      %35 = sbr.rel (0) target = $region13
    $region12: #{triangular_sylvester_forward.1} parent=1 // pred_region
      %s37 = ssub.s32 1024, 1024
      %38 = vsyncadd [#allocation5], %s37
      %s39 = sshll.u32 [#allocation6], 4
      %s40 = int_to_ptr.vmem [resolvable:$true] %s39
      %45 = dma.hbm_to_vmem [thread:$0]  %s2, 1024, %s40, [#allocation5], 128, 128, 8
    $region13: #{triangular_sylvester_forward.1} parent=1 // pred_fallthru
      _
    // Predicated region
    $region14: #{triangular_sylvester_forward.1} parent=1 // pred_check
      _
    $region15: #{triangular_sylvester_forward.1} parent=1 // pred_check_branch
      %47 = sbr.rel (0) target = $region17
    $region16: #{triangular_sylvester_forward.1} parent=1 // pred_region
      %s49 = ssub.s32 128, 128
      %50 = vsyncadd [#allocation8], %s49
      %s52 = sshll.u32 [#allocation7], 4
      %s53 = int_to_ptr.vmem [resolvable:$true] %s52
      %55 = dma.hbm_to_vmem [thread:$0]  %s3, 128, %s53, [#allocation8]
    $region17: #{triangular_sylvester_forward.1} parent=1 // pred_fallthru
      _
    // Predicated region
    $region18: #{triangular_sylvester_forward.1} parent=1 // pred_check
      _
    $region19: #{triangular_sylvester_forward.1} parent=1 // pred_check_branch
      %57 = sbr.rel (0) target = $region21
    $region20: #{triangular_sylvester_forward.1} parent=1 // pred_region
      %58 = dma.done [#allocation3], 128
    $region21: #{triangular_sylvester_forward.1} parent=1 // pred_fallthru
      _
    // Predicated region
    $region22: #{triangular_sylvester_forward.1} parent=1 // pred_check
      _
    $region23: #{triangular_sylvester_forward.1} parent=1 // pred_check_branch
      %60 = sbr.rel (0) target = $region25
    $region24: #{triangular_sylvester_forward.1} parent=1 // pred_region
      %61 = dma.done [#allocation5], 1024
    $region25: #{triangular_sylvester_forward.1} parent=1 // pred_fallthru
      _
    // Predicated region
    $region26: #{triangular_sylvester_forward.1} parent=1 // pred_check
      _
    $region27: #{triangular_sylvester_forward.1} parent=1 // pred_check_branch
      %63 = sbr.rel (0) target = $region29
    $region28: #{triangular_sylvester_forward.1} parent=1 // pred_region
      %64 = dma.done [#allocation5], 1024
    $region29: #{triangular_sylvester_forward.1} parent=1 // pred_fallthru
      _
    // Predicated region
    $region30: #{triangular_sylvester_forward.1} parent=1 // pred_check
      _
    $region31: #{triangular_sylvester_forward.1} parent=1 // pred_check_branch
      %66 = sbr.rel (0) target = $region33
    $region32: #{triangular_sylvester_forward.1} parent=1 // pred_region
      %67 = dma.done [#allocation8], 128
    $region33: #{triangular_sylvester_forward.1} parent=1 // pred_fallthru
      _
    %v68 = vld [vmem:[#allocation2] sm:$0xff]
    %v69 = vld [vmem:[#allocation4] sm:$0xff]
    %v70 = vld [vmem:[#allocation4 + $0x8] sm:$0xff]
    %v71 = vld [vmem:[#allocation4 + $0x10] sm:$0xff]
    %v72 = vld [vmem:[#allocation4 + $0x18] sm:$0xff]
    %v73 = vld [vmem:[#allocation4 + $0x20] sm:$0xff]
    %v74 = vld [vmem:[#allocation4 + $0x28] sm:$0xff]
    %v75 = vld [vmem:[#allocation4 + $0x30] sm:$0xff]
    %v76 = vld [vmem:[#allocation4 + $0x38] sm:$0xff]
    %v77 = vld [vmem:[#allocation6] sm:$0xff]
    %v78 = vld [vmem:[#allocation6 + $0x8] sm:$0xff]
    %v79 = vld [vmem:[#allocation6 + $0x10] sm:$0xff]
    %v80 = vld [vmem:[#allocation6 + $0x18] sm:$0xff]
    %v81 = vld [vmem:[#allocation6 + $0x20] sm:$0xff]
    %v82 = vld [vmem:[#allocation6 + $0x28] sm:$0xff]
    %v83 = vld [vmem:[#allocation6 + $0x30] sm:$0xff]
    %v84 = vld [vmem:[#allocation6 + $0x38] sm:$0xff]
    %v85 = vld [vmem:[#allocation7] sm:$0xff]
    %v86 = vlaneseq
    %v87 = vshrl.u32 %v86, 7
    %v88 = vlaneseq
    %v89 = vand.u32 %v88, 127
    %vm90 = vcmp.eq.s32.totalorder %v87, %v89
    %v91 = vsel %vm90, 1, 0
    %v92 = vcvt.s32.f32 %v91
    %v93 = vmul.f32 %v69, %v92
    %v94 = vmul.f32 %v70, %v92
    %v95 = vmul.f32 %v71, %v92
    %v96 = vmul.f32 %v72, %v92
    %v97 = vmul.f32 %v73, %v92
    %v98 = vmul.f32 %v74, %v92
    %v99 = vmul.f32 %v75, %v92
    %v100 = vmul.f32 %v76, %v92
    %vm101 = vcmask 64512
    %v102 = vsel %vm101, %v93, 0.0
    %103 = vadd.xlane.f32.xlu0 %v102
    %v104 = vpop.xlane.xlu0 %103
    %v105 = vsel %vm101, %v94, 0.0
    %106 = vadd.xlane.f32.xlu0 %v105
    %v107 = vpop.xlane.xlu0 %106
    %v108 = vsel %vm101, %v95, 0.0
    %109 = vadd.xlane.f32.xlu0 %v108
    %v110 = vpop.xlane.xlu0 %109
    %v111 = vsel %vm101, %v96, 0.0
    %112 = vadd.xlane.f32.xlu0 %v111
    %v113 = vpop.xlane.xlu0 %112
    %v114 = vsel %vm101, %v97, 0.0
    %115 = vadd.xlane.f32.xlu0 %v114
    %v116 = vpop.xlane.xlu0 %115
    %v117 = vsel %vm101, %v98, 0.0
    %118 = vadd.xlane.f32.xlu0 %v117
    %v119 = vpop.xlane.xlu0 %118
    %v120 = vsel %vm101, %v99, 0.0
    %121 = vadd.xlane.f32.xlu0 %v120
    %v122 = vpop.xlane.xlu0 %121
    %v123 = vsel %vm101, %v100, 0.0
    %124 = vadd.xlane.f32.xlu0 %v123
    %v125 = vpop.xlane.xlu0 %124
    %v126 = vmul.f32 %v77, %v92
    %v127 = vmul.f32 %v78, %v92
    %v128 = vmul.f32 %v79, %v92
    %v129 = vmul.f32 %v80, %v92
    %v130 = vmul.f32 %v81, %v92
    %v131 = vmul.f32 %v82, %v92
    %v132 = vmul.f32 %v83, %v92
    %v133 = vmul.f32 %v84, %v92
    %v134 = vsel %vm101, %v126, 0.0
    %135 = vadd.xlane.f32.xlu0 %v134
    %v136 = vpop.xlane.xlu0 %135
    %v137 = vsel %vm101, %v127, 0.0
    %138 = vadd.xlane.f32.xlu0 %v137
    %v139 = vpop.xlane.xlu0 %138
    %v140 = vsel %vm101, %v128, 0.0
    %141 = vadd.xlane.f32.xlu0 %v140
    %v142 = vpop.xlane.xlu0 %141
    %v143 = vsel %vm101, %v129, 0.0
    %144 = vadd.xlane.f32.xlu0 %v143
    %v145 = vpop.xlane.xlu0 %144
    %v146 = vsel %vm101, %v130, 0.0
    %147 = vadd.xlane.f32.xlu0 %v146
    %v148 = vpop.xlane.xlu0 %147
    %v149 = vsel %vm101, %v131, 0.0
    %150 = vadd.xlane.f32.xlu0 %v149
    %v151 = vpop.xlane.xlu0 %150
    %v152 = vsel %vm101, %v132, 0.0
    %153 = vadd.xlane.f32.xlu0 %v152
    %v154 = vpop.xlane.xlu0 %153
    %v155 = vsel %vm101, %v133, 0.0
    %156 = vadd.xlane.f32.xlu0 %v155
    %v157 = vpop.xlane.xlu0 %156
    %v158 = vadd.s32 %v87, %v89
    %vm159 = vcmp.eq.s32.totalorder %v158, 7
    %v160 = vsel %vm159, 1, 0
    %v161 = vcvt.s32.f32 %v160
    %v163 = vcombine.high %v68, %v68
    %v165 = vunpack.c.l.s4 1966171168
    %v166 = vunpack.c.0.s8 %v165
    %v167 = vlaneseq
    %v168 = vshrl.u32 %v167, 7
    %v169 = vsub.s32 %v166, %v168
    %v170 = vrot.slane %v68, %v169
    %v172 = vunpack.c.l.s4 1966171168
    %v173 = vunpack.c.0.s8 %v172
    %v174 = vlaneseq
    %v175 = vshrl.u32 %v174, 7
    %v176 = vsub.s32 %v173, %v175
    %v177 = vrot.slane %v163, %v176
    %v178 = vcombine.high %v170, %v170
    %v179 = vcombine.high %v177, %v177
    %v181 = vunpack.c.l.s4 1966171168
    %v182 = vunpack.c.0.s8 %v181
    %v183 = vlaneseq
    %v184 = vshrl.u32 %v183, 7
    %v185 = vsub.s32 %v182, %v184
    %v186 = vrot.slane %v170, %v185
    %v188 = vunpack.c.l.s4 1966171168
    %v189 = vunpack.c.0.s8 %v188
    %v190 = vlaneseq
    %v191 = vshrl.u32 %v190, 7
    %v192 = vsub.s32 %v189, %v191
    %v193 = vrot.slane %v177, %v192
    %v195 = vunpack.c.l.s4 1966171168
    %v196 = vunpack.c.0.s8 %v195
    %v197 = vlaneseq
    %v198 = vshrl.u32 %v197, 7
    %v199 = vsub.s32 %v196, %v198
    %v200 = vrot.slane %v178, %v199
    %v202 = vunpack.c.l.s4 1966171168
    %v203 = vunpack.c.0.s8 %v202
    %v204 = vlaneseq
    %v205 = vshrl.u32 %v204, 7
    %v206 = vsub.s32 %v203, %v205
    %v207 = vrot.slane %v179, %v206
    %v208 = vcombine.high %v186, %v186
    %v209 = vcombine.high %v193, %v193
    %v210 = vcombine.high %v200, %v200
    %v211 = vcombine.high %v207, %v207
    %v212 = vlaneseq
    %v213 = vshrl.u32 %v212, 7
    %v214 = vsub.s32 0, %v213
    %v215 = vrot.slane %v186, %v214
    %v216 = vlaneseq
    %v217 = vshrl.u32 %v216, 7
    %v218 = vsub.s32 0, %v217
    %v219 = vrot.slane %v200, %v218
    %v220 = vlaneseq
    %v221 = vshrl.u32 %v220, 7
    %v222 = vsub.s32 0, %v221
    %v223 = vrot.slane %v208, %v222
    %v224 = vlaneseq
    %v225 = vshrl.u32 %v224, 7
    %v226 = vsub.s32 0, %v225
    %v227 = vrot.slane %v210, %v226
    %v228 = vlaneseq
    %v229 = vshrl.u32 %v228, 7
    %v230 = vsub.s32 0, %v229
    %v231 = vrot.slane %v193, %v230
    %v232 = vlaneseq
    %v233 = vshrl.u32 %v232, 7
    %v234 = vsub.s32 0, %v233
    %v235 = vrot.slane %v207, %v234
    %v236 = vlaneseq
    %v237 = vshrl.u32 %v236, 7
    %v238 = vsub.s32 0, %v237
    %v239 = vrot.slane %v209, %v238
    %v240 = vlaneseq
    %v241 = vshrl.u32 %v240, 7
    %v242 = vsub.s32 0, %v241
    %v243 = vrot.slane %v211, %v242
    %v252 = vmul.f32 %v215, %v161
    %v253 = vmul.f32 %v219, %v161
    %v254 = vmul.f32 %v223, %v161
    %v255 = vmul.f32 %v227, %v161
    %v256 = vmul.f32 %v231, %v161
    %v257 = vmul.f32 %v235, %v161
    %v258 = vmul.f32 %v239, %v161
    %v259 = vmul.f32 %v243, %v161
    %v260 = vsel %vm101, %v252, 0.0
    %261 = vadd.xlane.f32.xlu0 %v260
    %v262 = vpop.xlane.xlu0 %261
    %v263 = vsel %vm101, %v253, 0.0
    %264 = vadd.xlane.f32.xlu0 %v263
    %v265 = vpop.xlane.xlu0 %264
    %v266 = vsel %vm101, %v254, 0.0
    %267 = vadd.xlane.f32.xlu0 %v266
    %v268 = vpop.xlane.xlu0 %267
    %v269 = vsel %vm101, %v255, 0.0
    %270 = vadd.xlane.f32.xlu0 %v269
    %v271 = vpop.xlane.xlu0 %270
    %v272 = vsel %vm101, %v256, 0.0
    %273 = vadd.xlane.f32.xlu0 %v272
    %v274 = vpop.xlane.xlu0 %273
    %v275 = vsel %vm101, %v257, 0.0
    %276 = vadd.xlane.f32.xlu0 %v275
    %v277 = vpop.xlane.xlu0 %276
    %v278 = vsel %vm101, %v258, 0.0
    %279 = vadd.xlane.f32.xlu0 %v278
    %v280 = vpop.xlane.xlu0 %279
    %v281 = vsel %vm101, %v259, 0.0
    %282 = vadd.xlane.f32.xlu0 %v281
    %v283 = vpop.xlane.xlu0 %282
    %v292 = vlaneseq
    %v293 = vshrl.u32 %v292, 7
    %v294 = vsub.s32 0, %v293
    %v295 = vrot.slane %v77, %v294
    %297 = vbcast.lane.b32.xlu0 %v295, 256
    %v298 = vpop.permute.xlu0 %297
    %v299 = vlaneseq
    %v300 = vshrl.u32 %v299, 7
    %v301 = vsub.s32 1, %v300
    %v302 = vrot.slane %v77, %v301
    %304 = vbcast.lane.b32.xlu0 %v302, 256
    %v305 = vpop.permute.xlu0 %304
    %v306 = vlaneseq
    %v307 = vshrl.u32 %v306, 7
    %v308 = vsub.s32 2, %v307
    %v309 = vrot.slane %v77, %v308
    %311 = vbcast.lane.b32.xlu0 %v309, 256
    %v312 = vpop.permute.xlu0 %311
    %v313 = vlaneseq
    %v314 = vshrl.u32 %v313, 7
    %v315 = vsub.s32 3, %v314
    %v316 = vrot.slane %v77, %v315
    %318 = vbcast.lane.b32.xlu0 %v316, 256
    %v319 = vpop.permute.xlu0 %318
    %v320 = vlaneseq
    %v321 = vshrl.u32 %v320, 7
    %v322 = vsub.s32 4, %v321
    %v323 = vrot.slane %v77, %v322
    %325 = vbcast.lane.b32.xlu0 %v323, 256
    %v326 = vpop.permute.xlu0 %325
    %v327 = vlaneseq
    %v328 = vshrl.u32 %v327, 7
    %v329 = vsub.s32 5, %v328
    %v330 = vrot.slane %v77, %v329
    %332 = vbcast.lane.b32.xlu0 %v330, 256
    %v333 = vpop.permute.xlu0 %332
    %v334 = vlaneseq
    %v335 = vshrl.u32 %v334, 7
    %v336 = vsub.s32 6, %v335
    %v337 = vrot.slane %v77, %v336
    %339 = vbcast.lane.b32.xlu0 %v337, 256
    %v340 = vpop.permute.xlu0 %339
    %v341 = vlaneseq
    %v342 = vshrl.u32 %v341, 7
    %v343 = vsub.s32 7, %v342
    %v344 = vrot.slane %v77, %v343
    %346 = vbcast.lane.b32.xlu0 %v344, 256
    %v347 = vpop.permute.xlu0 %346
    %v348 = vlaneseq
    %v349 = vshrl.u32 %v348, 7
    %v350 = vsub.s32 0, %v349
    %v351 = vrot.slane %v78, %v350
    %353 = vbcast.lane.b32.xlu0 %v351, 256
    %v354 = vpop.permute.xlu0 %353
    %v355 = vlaneseq
    %v356 = vshrl.u32 %v355, 7
    %v357 = vsub.s32 1, %v356
    %v358 = vrot.slane %v78, %v357
    %360 = vbcast.lane.b32.xlu0 %v358, 256
    %v361 = vpop.permute.xlu0 %360
    %v362 = vlaneseq
    %v363 = vshrl.u32 %v362, 7
    %v364 = vsub.s32 2, %v363
    %v365 = vrot.slane %v78, %v364
    %367 = vbcast.lane.b32.xlu0 %v365, 256
    %v368 = vpop.permute.xlu0 %367
    %v369 = vlaneseq
    %v370 = vshrl.u32 %v369, 7
    %v371 = vsub.s32 3, %v370
    %v372 = vrot.slane %v78, %v371
    %374 = vbcast.lane.b32.xlu0 %v372, 256
    %v375 = vpop.permute.xlu0 %374
    %v376 = vlaneseq
    %v377 = vshrl.u32 %v376, 7
    %v378 = vsub.s32 4, %v377
    %v379 = vrot.slane %v78, %v378
    %381 = vbcast.lane.b32.xlu0 %v379, 256
    %v382 = vpop.permute.xlu0 %381
    %v383 = vlaneseq
    %v384 = vshrl.u32 %v383, 7
    %v385 = vsub.s32 5, %v384
    %v386 = vrot.slane %v78, %v385
    %388 = vbcast.lane.b32.xlu0 %v386, 256
    %v389 = vpop.permute.xlu0 %388
    %v390 = vlaneseq
    %v391 = vshrl.u32 %v390, 7
    %v392 = vsub.s32 6, %v391
    %v393 = vrot.slane %v78, %v392
    %395 = vbcast.lane.b32.xlu0 %v393, 256
    %v396 = vpop.permute.xlu0 %395
    %v397 = vlaneseq
    %v398 = vshrl.u32 %v397, 7
    %v399 = vsub.s32 7, %v398
    %v400 = vrot.slane %v78, %v399
    %402 = vbcast.lane.b32.xlu0 %v400, 256
    %v403 = vpop.permute.xlu0 %402
    %v404 = vlaneseq
    %v405 = vshrl.u32 %v404, 7
    %v406 = vsub.s32 0, %v405
    %v407 = vrot.slane %v79, %v406
    %409 = vbcast.lane.b32.xlu0 %v407, 256
    %v410 = vpop.permute.xlu0 %409
    %v411 = vlaneseq
    %v412 = vshrl.u32 %v411, 7
    %v413 = vsub.s32 1, %v412
    %v414 = vrot.slane %v79, %v413
    %416 = vbcast.lane.b32.xlu0 %v414, 256
    %v417 = vpop.permute.xlu0 %416
    %v418 = vlaneseq
    %v419 = vshrl.u32 %v418, 7
    %v420 = vsub.s32 2, %v419
    %v421 = vrot.slane %v79, %v420
    %423 = vbcast.lane.b32.xlu0 %v421, 256
    %v424 = vpop.permute.xlu0 %423
    %v425 = vlaneseq
    %v426 = vshrl.u32 %v425, 7
    %v427 = vsub.s32 3, %v426
    %v428 = vrot.slane %v79, %v427
    %430 = vbcast.lane.b32.xlu0 %v428, 256
    %v431 = vpop.permute.xlu0 %430
    %v432 = vlaneseq
    %v433 = vshrl.u32 %v432, 7
    %v434 = vsub.s32 4, %v433
    %v435 = vrot.slane %v79, %v434
    %437 = vbcast.lane.b32.xlu0 %v435, 256
    %v438 = vpop.permute.xlu0 %437
    %v439 = vlaneseq
    %v440 = vshrl.u32 %v439, 7
    %v441 = vsub.s32 5, %v440
    %v442 = vrot.slane %v79, %v441
    %444 = vbcast.lane.b32.xlu0 %v442, 256
    %v445 = vpop.permute.xlu0 %444
    %v446 = vlaneseq
    %v447 = vshrl.u32 %v446, 7
    %v448 = vsub.s32 6, %v447
    %v449 = vrot.slane %v79, %v448
    %451 = vbcast.lane.b32.xlu0 %v449, 256
    %v452 = vpop.permute.xlu0 %451
    %v453 = vlaneseq
    %v454 = vshrl.u32 %v453, 7
    %v455 = vsub.s32 7, %v454
    %v456 = vrot.slane %v79, %v455
    %458 = vbcast.lane.b32.xlu0 %v456, 256
    %v459 = vpop.permute.xlu0 %458
    %v460 = vlaneseq
    %v461 = vshrl.u32 %v460, 7
    %v462 = vsub.s32 0, %v461
    %v463 = vrot.slane %v80, %v462
    %465 = vbcast.lane.b32.xlu0 %v463, 256
    %v466 = vpop.permute.xlu0 %465
    %v467 = vlaneseq
    %v468 = vshrl.u32 %v467, 7
    %v469 = vsub.s32 1, %v468
    %v470 = vrot.slane %v80, %v469
    %472 = vbcast.lane.b32.xlu0 %v470, 256
    %v473 = vpop.permute.xlu0 %472
    %v474 = vlaneseq
    %v475 = vshrl.u32 %v474, 7
    %v476 = vsub.s32 2, %v475
    %v477 = vrot.slane %v80, %v476
    %479 = vbcast.lane.b32.xlu0 %v477, 256
    %v480 = vpop.permute.xlu0 %479
    %v481 = vlaneseq
    %v482 = vshrl.u32 %v481, 7
    %v483 = vsub.s32 3, %v482
    %v484 = vrot.slane %v80, %v483
    %486 = vbcast.lane.b32.xlu0 %v484, 256
    %v487 = vpop.permute.xlu0 %486
    %v488 = vlaneseq
    %v489 = vshrl.u32 %v488, 7
    %v490 = vsub.s32 4, %v489
    %v491 = vrot.slane %v80, %v490
    %493 = vbcast.lane.b32.xlu0 %v491, 256
    %v494 = vpop.permute.xlu0 %493
    %v495 = vlaneseq
    %v496 = vshrl.u32 %v495, 7
    %v497 = vsub.s32 5, %v496
    %v498 = vrot.slane %v80, %v497
    %500 = vbcast.lane.b32.xlu0 %v498, 256
    %v501 = vpop.permute.xlu0 %500
    %v502 = vlaneseq
    %v503 = vshrl.u32 %v502, 7
    %v504 = vsub.s32 6, %v503
    %v505 = vrot.slane %v80, %v504
    %507 = vbcast.lane.b32.xlu0 %v505, 256
    %v508 = vpop.permute.xlu0 %507
    %v509 = vlaneseq
    %v510 = vshrl.u32 %v509, 7
    %v511 = vsub.s32 7, %v510
    %v512 = vrot.slane %v80, %v511
    %514 = vbcast.lane.b32.xlu0 %v512, 256
    %v515 = vpop.permute.xlu0 %514
    %v516 = vlaneseq
    %v517 = vshrl.u32 %v516, 7
    %v518 = vsub.s32 0, %v517
    %v519 = vrot.slane %v81, %v518
    %521 = vbcast.lane.b32.xlu0 %v519, 256
    %v522 = vpop.permute.xlu0 %521
    %v523 = vlaneseq
    %v524 = vshrl.u32 %v523, 7
    %v525 = vsub.s32 1, %v524
    %v526 = vrot.slane %v81, %v525
    %528 = vbcast.lane.b32.xlu0 %v526, 256
    %v529 = vpop.permute.xlu0 %528
    %v530 = vlaneseq
    %v531 = vshrl.u32 %v530, 7
    %v532 = vsub.s32 2, %v531
    %v533 = vrot.slane %v81, %v532
    %535 = vbcast.lane.b32.xlu0 %v533, 256
    %v536 = vpop.permute.xlu0 %535
    %v537 = vlaneseq
    %v538 = vshrl.u32 %v537, 7
    %v539 = vsub.s32 3, %v538
    %v540 = vrot.slane %v81, %v539
    %542 = vbcast.lane.b32.xlu0 %v540, 256
    %v543 = vpop.permute.xlu0 %542
    %v544 = vlaneseq
    %v545 = vshrl.u32 %v544, 7
    %v546 = vsub.s32 4, %v545
    %v547 = vrot.slane %v81, %v546
    %549 = vbcast.lane.b32.xlu0 %v547, 256
    %v550 = vpop.permute.xlu0 %549
    %v551 = vlaneseq
    %v552 = vshrl.u32 %v551, 7
    %v553 = vsub.s32 5, %v552
    %v554 = vrot.slane %v81, %v553
    %556 = vbcast.lane.b32.xlu0 %v554, 256
    %v557 = vpop.permute.xlu0 %556
    %v558 = vlaneseq
    %v559 = vshrl.u32 %v558, 7
    %v560 = vsub.s32 6, %v559
    %v561 = vrot.slane %v81, %v560
    %563 = vbcast.lane.b32.xlu0 %v561, 256
    %v564 = vpop.permute.xlu0 %563
    %v565 = vlaneseq
    %v566 = vshrl.u32 %v565, 7
    %v567 = vsub.s32 7, %v566
    %v568 = vrot.slane %v81, %v567
    %570 = vbcast.lane.b32.xlu0 %v568, 256
    %v571 = vpop.permute.xlu0 %570
    %v572 = vlaneseq
    %v573 = vshrl.u32 %v572, 7
    %v574 = vsub.s32 0, %v573
    %v575 = vrot.slane %v82, %v574
    %577 = vbcast.lane.b32.xlu0 %v575, 256
    %v578 = vpop.permute.xlu0 %577
    %v579 = vlaneseq
    %v580 = vshrl.u32 %v579, 7
    %v581 = vsub.s32 1, %v580
    %v582 = vrot.slane %v82, %v581
    %584 = vbcast.lane.b32.xlu0 %v582, 256
    %v585 = vpop.permute.xlu0 %584
    %v586 = vlaneseq
    %v587 = vshrl.u32 %v586, 7
    %v588 = vsub.s32 2, %v587
    %v589 = vrot.slane %v82, %v588
    %591 = vbcast.lane.b32.xlu0 %v589, 256
    %v592 = vpop.permute.xlu0 %591
    %v593 = vlaneseq
    %v594 = vshrl.u32 %v593, 7
    %v595 = vsub.s32 3, %v594
    %v596 = vrot.slane %v82, %v595
    %598 = vbcast.lane.b32.xlu0 %v596, 256
    %v599 = vpop.permute.xlu0 %598
    %v600 = vlaneseq
    %v601 = vshrl.u32 %v600, 7
    %v602 = vsub.s32 4, %v601
    %v603 = vrot.slane %v82, %v602
    %605 = vbcast.lane.b32.xlu0 %v603, 256
    %v606 = vpop.permute.xlu0 %605
    %v607 = vlaneseq
    %v608 = vshrl.u32 %v607, 7
    %v609 = vsub.s32 5, %v608
    %v610 = vrot.slane %v82, %v609
    %612 = vbcast.lane.b32.xlu0 %v610, 256
    %v613 = vpop.permute.xlu0 %612
    %v614 = vlaneseq
    %v615 = vshrl.u32 %v614, 7
    %v616 = vsub.s32 6, %v615
    %v617 = vrot.slane %v82, %v616
    %619 = vbcast.lane.b32.xlu0 %v617, 256
    %v620 = vpop.permute.xlu0 %619
    %v621 = vlaneseq
    %v622 = vshrl.u32 %v621, 7
    %v623 = vsub.s32 7, %v622
    %v624 = vrot.slane %v82, %v623
    %626 = vbcast.lane.b32.xlu0 %v624, 256
    %v627 = vpop.permute.xlu0 %626
    %v628 = vlaneseq
    %v629 = vshrl.u32 %v628, 7
    %v630 = vsub.s32 0, %v629
    %v631 = vrot.slane %v83, %v630
    %633 = vbcast.lane.b32.xlu0 %v631, 256
    %v634 = vpop.permute.xlu0 %633
    %v635 = vlaneseq
    %v636 = vshrl.u32 %v635, 7
    %v637 = vsub.s32 1, %v636
    %v638 = vrot.slane %v83, %v637
    %640 = vbcast.lane.b32.xlu0 %v638, 256
    %v641 = vpop.permute.xlu0 %640
    %v642 = vlaneseq
    %v643 = vshrl.u32 %v642, 7
    %v644 = vsub.s32 2, %v643
    %v645 = vrot.slane %v83, %v644
    %647 = vbcast.lane.b32.xlu0 %v645, 256
    %v648 = vpop.permute.xlu0 %647
    %v649 = vlaneseq
    %v650 = vshrl.u32 %v649, 7
    %v651 = vsub.s32 3, %v650
    %v652 = vrot.slane %v83, %v651
    %654 = vbcast.lane.b32.xlu0 %v652, 256
    %v655 = vpop.permute.xlu0 %654
    %v656 = vlaneseq
    %v657 = vshrl.u32 %v656, 7
    %v658 = vsub.s32 4, %v657
    %v659 = vrot.slane %v83, %v658
    %661 = vbcast.lane.b32.xlu0 %v659, 256
    %v662 = vpop.permute.xlu0 %661
    %v663 = vlaneseq
    %v664 = vshrl.u32 %v663, 7
    %v665 = vsub.s32 5, %v664
    %v666 = vrot.slane %v83, %v665
    %668 = vbcast.lane.b32.xlu0 %v666, 256
    %v669 = vpop.permute.xlu0 %668
    %v670 = vlaneseq
    %v671 = vshrl.u32 %v670, 7
    %v672 = vsub.s32 6, %v671
    %v673 = vrot.slane %v83, %v672
    %675 = vbcast.lane.b32.xlu0 %v673, 256
    %v676 = vpop.permute.xlu0 %675
    %v677 = vlaneseq
    %v678 = vshrl.u32 %v677, 7
    %v679 = vsub.s32 7, %v678
    %v680 = vrot.slane %v83, %v679
    %682 = vbcast.lane.b32.xlu0 %v680, 256
    %v683 = vpop.permute.xlu0 %682
    %v684 = vlaneseq
    %v685 = vshrl.u32 %v684, 7
    %v686 = vsub.s32 0, %v685
    %v687 = vrot.slane %v84, %v686
    %689 = vbcast.lane.b32.xlu0 %v687, 256
    %v690 = vpop.permute.xlu0 %689
    %v691 = vlaneseq
    %v692 = vshrl.u32 %v691, 7
    %v693 = vsub.s32 1, %v692
    %v694 = vrot.slane %v84, %v693
    %696 = vbcast.lane.b32.xlu0 %v694, 256
    %v697 = vpop.permute.xlu0 %696
    %v698 = vlaneseq
    %v699 = vshrl.u32 %v698, 7
    %v700 = vsub.s32 2, %v699
    %v701 = vrot.slane %v84, %v700
    %703 = vbcast.lane.b32.xlu0 %v701, 256
    %v704 = vpop.permute.xlu0 %703
    %v705 = vlaneseq
    %v706 = vshrl.u32 %v705, 7
    %v707 = vsub.s32 3, %v706
    %v708 = vrot.slane %v84, %v707
    %710 = vbcast.lane.b32.xlu0 %v708, 256
    %v711 = vpop.permute.xlu0 %710
    %v712 = vlaneseq
    %v713 = vshrl.u32 %v712, 7
    %v714 = vsub.s32 4, %v713
    %v715 = vrot.slane %v84, %v714
    %717 = vbcast.lane.b32.xlu0 %v715, 256
    %v718 = vpop.permute.xlu0 %717
    %v719 = vlaneseq
    %v720 = vshrl.u32 %v719, 7
    %v721 = vsub.s32 5, %v720
    %v722 = vrot.slane %v84, %v721
    %724 = vbcast.lane.b32.xlu0 %v722, 256
    %v725 = vpop.permute.xlu0 %724
    %v726 = vlaneseq
    %v727 = vshrl.u32 %v726, 7
    %v728 = vsub.s32 6, %v727
    %v729 = vrot.slane %v84, %v728
    %731 = vbcast.lane.b32.xlu0 %v729, 256
    %v732 = vpop.permute.xlu0 %731
    %v733 = vlaneseq
    %v734 = vshrl.u32 %v733, 7
    %v735 = vsub.s32 7, %v734
    %v736 = vrot.slane %v84, %v735
    %738 = vbcast.lane.b32.xlu0 %v736, 256
    %v739 = vpop.permute.xlu0 %738
    %v804 = vmul.f32 %v262, %v298
    %v805 = vmul.f32 %v262, %v305
    %v806 = vmul.f32 %v262, %v312
    %v807 = vmul.f32 %v262, %v319
    %v808 = vmul.f32 %v262, %v326
    %v809 = vmul.f32 %v262, %v333
    %v810 = vmul.f32 %v262, %v340
    %v811 = vmul.f32 %v262, %v347
    %v812 = vmul.f32 %v265, %v354
    %v813 = vmul.f32 %v265, %v361
    %v814 = vmul.f32 %v265, %v368
    %v815 = vmul.f32 %v265, %v375
    %v816 = vmul.f32 %v265, %v382
    %v817 = vmul.f32 %v265, %v389
    %v818 = vmul.f32 %v265, %v396
    %v819 = vmul.f32 %v265, %v403
    %v820 = vmul.f32 %v268, %v410
    %v821 = vmul.f32 %v268, %v417
    %v822 = vmul.f32 %v268, %v424
    %v823 = vmul.f32 %v268, %v431
    %v824 = vmul.f32 %v268, %v438
    %v825 = vmul.f32 %v268, %v445
    %v826 = vmul.f32 %v268, %v452
    %v827 = vmul.f32 %v268, %v459
    %v828 = vmul.f32 %v271, %v466
    %v829 = vmul.f32 %v271, %v473
    %v830 = vmul.f32 %v271, %v480
    %v831 = vmul.f32 %v271, %v487
    %v832 = vmul.f32 %v271, %v494
    %v833 = vmul.f32 %v271, %v501
    %v834 = vmul.f32 %v271, %v508
    %v835 = vmul.f32 %v271, %v515
    %v836 = vmul.f32 %v274, %v522
    %v837 = vmul.f32 %v274, %v529
    %v838 = vmul.f32 %v274, %v536
    %v839 = vmul.f32 %v274, %v543
    %v840 = vmul.f32 %v274, %v550
    %v841 = vmul.f32 %v274, %v557
    %v842 = vmul.f32 %v274, %v564
    %v843 = vmul.f32 %v274, %v571
    %v844 = vmul.f32 %v277, %v578
    %v845 = vmul.f32 %v277, %v585
    %v846 = vmul.f32 %v277, %v592
    %v847 = vmul.f32 %v277, %v599
    %v848 = vmul.f32 %v277, %v606
    %v849 = vmul.f32 %v277, %v613
    %v850 = vmul.f32 %v277, %v620
    %v851 = vmul.f32 %v277, %v627
    %v852 = vmul.f32 %v280, %v634
    %v853 = vmul.f32 %v280, %v641
    %v854 = vmul.f32 %v280, %v648
    %v855 = vmul.f32 %v280, %v655
    %v856 = vmul.f32 %v280, %v662
    %v857 = vmul.f32 %v280, %v669
    %v858 = vmul.f32 %v280, %v676
    %v859 = vmul.f32 %v280, %v683
    %v860 = vmul.f32 %v283, %v690
    %v861 = vmul.f32 %v283, %v697
    %v862 = vmul.f32 %v283, %v704
    %v863 = vmul.f32 %v283, %v711
    %v864 = vmul.f32 %v283, %v718
    %v865 = vmul.f32 %v283, %v725
    %v866 = vmul.f32 %v283, %v732
    %v867 = vmul.f32 %v283, %v739
    %932 = vset.pattern.permute.xlu0 0
    %933 = vperm.xlu0 %932, %v804
    %v934 = vpop.permute.xlu0 %933
    %935 = vset.pattern.permute.xlu0 0
    %936 = vperm.xlu0 %935, %v805
    %v937 = vpop.permute.xlu0 %936
    %938 = vset.pattern.permute.xlu0 0
    %939 = vperm.xlu0 %938, %v806
    %v940 = vpop.permute.xlu0 %939
    %941 = vset.pattern.permute.xlu0 0
    %942 = vperm.xlu0 %941, %v807
    %v943 = vpop.permute.xlu0 %942
    %944 = vset.pattern.permute.xlu0 0
    %945 = vperm.xlu0 %944, %v808
    %v946 = vpop.permute.xlu0 %945
    %947 = vset.pattern.permute.xlu0 0
    %948 = vperm.xlu0 %947, %v809
    %v949 = vpop.permute.xlu0 %948
    %950 = vset.pattern.permute.xlu0 0
    %951 = vperm.xlu0 %950, %v810
    %v952 = vpop.permute.xlu0 %951
    %953 = vset.pattern.permute.xlu0 0
    %954 = vperm.xlu0 %953, %v811
    %v955 = vpop.permute.xlu0 %954
    %956 = vset.pattern.permute.xlu0 0
    %957 = vperm.xlu0 %956, %v812
    %v958 = vpop.permute.xlu0 %957
    %959 = vset.pattern.permute.xlu0 0
    %960 = vperm.xlu0 %959, %v813
    %v961 = vpop.permute.xlu0 %960
    %962 = vset.pattern.permute.xlu0 0
    %963 = vperm.xlu0 %962, %v814
    %v964 = vpop.permute.xlu0 %963
    %965 = vset.pattern.permute.xlu0 0
    %966 = vperm.xlu0 %965, %v815
    %v967 = vpop.permute.xlu0 %966
    %968 = vset.pattern.permute.xlu0 0
    %969 = vperm.xlu0 %968, %v816
    %v970 = vpop.permute.xlu0 %969
    %971 = vset.pattern.permute.xlu0 0
    %972 = vperm.xlu0 %971, %v817
    %v973 = vpop.permute.xlu0 %972
    %974 = vset.pattern.permute.xlu0 0
    %975 = vperm.xlu0 %974, %v818
    %v976 = vpop.permute.xlu0 %975
    %977 = vset.pattern.permute.xlu0 0
    %978 = vperm.xlu0 %977, %v819
    %v979 = vpop.permute.xlu0 %978
    %980 = vset.pattern.permute.xlu0 0
    %981 = vperm.xlu0 %980, %v820
    %v982 = vpop.permute.xlu0 %981
    %983 = vset.pattern.permute.xlu0 0
    %984 = vperm.xlu0 %983, %v821
    %v985 = vpop.permute.xlu0 %984
    %986 = vset.pattern.permute.xlu0 0
    %987 = vperm.xlu0 %986, %v822
    %v988 = vpop.permute.xlu0 %987
    %989 = vset.pattern.permute.xlu0 0
    %990 = vperm.xlu0 %989, %v823
    %v991 = vpop.permute.xlu0 %990
    %992 = vset.pattern.permute.xlu0 0
    %993 = vperm.xlu0 %992, %v824
    %v994 = vpop.permute.xlu0 %993
    %995 = vset.pattern.permute.xlu0 0
    %996 = vperm.xlu0 %995, %v825
    %v997 = vpop.permute.xlu0 %996
    %998 = vset.pattern.permute.xlu0 0
    %999 = vperm.xlu0 %998, %v826
    %v1000 = vpop.permute.xlu0 %999
    %1001 = vset.pattern.permute.xlu0 0
    %1002 = vperm.xlu0 %1001, %v827
    %v1003 = vpop.permute.xlu0 %1002
    %1004 = vset.pattern.permute.xlu0 0
    %1005 = vperm.xlu0 %1004, %v828
    %v1006 = vpop.permute.xlu0 %1005
    %1007 = vset.pattern.permute.xlu0 0
    %1008 = vperm.xlu0 %1007, %v829
    %v1009 = vpop.permute.xlu0 %1008
    %1010 = vset.pattern.permute.xlu0 0
    %1011 = vperm.xlu0 %1010, %v830
    %v1012 = vpop.permute.xlu0 %1011
    %1013 = vset.pattern.permute.xlu0 0
    %1014 = vperm.xlu0 %1013, %v831
    %v1015 = vpop.permute.xlu0 %1014
    %1016 = vset.pattern.permute.xlu0 0
    %1017 = vperm.xlu0 %1016, %v832
    %v1018 = vpop.permute.xlu0 %1017
    %1019 = vset.pattern.permute.xlu0 0
    %1020 = vperm.xlu0 %1019, %v833
    %v1021 = vpop.permute.xlu0 %1020
    %1022 = vset.pattern.permute.xlu0 0
    %1023 = vperm.xlu0 %1022, %v834
    %v1024 = vpop.permute.xlu0 %1023
    %1025 = vset.pattern.permute.xlu0 0
    %1026 = vperm.xlu0 %1025, %v835
    %v1027 = vpop.permute.xlu0 %1026
    %1028 = vset.pattern.permute.xlu0 0
    %1029 = vperm.xlu0 %1028, %v836
    %v1030 = vpop.permute.xlu0 %1029
    %1031 = vset.pattern.permute.xlu0 0
    %1032 = vperm.xlu0 %1031, %v837
    %v1033 = vpop.permute.xlu0 %1032
    %1034 = vset.pattern.permute.xlu0 0
    %1035 = vperm.xlu0 %1034, %v838
    %v1036 = vpop.permute.xlu0 %1035
    %1037 = vset.pattern.permute.xlu0 0
    %1038 = vperm.xlu0 %1037, %v839
    %v1039 = vpop.permute.xlu0 %1038
    %1040 = vset.pattern.permute.xlu0 0
    %1041 = vperm.xlu0 %1040, %v840
    %v1042 = vpop.permute.xlu0 %1041
    %1043 = vset.pattern.permute.xlu0 0
    %1044 = vperm.xlu0 %1043, %v841
    %v1045 = vpop.permute.xlu0 %1044
    %1046 = vset.pattern.permute.xlu0 0
    %1047 = vperm.xlu0 %1046, %v842
    %v1048 = vpop.permute.xlu0 %1047
    %1049 = vset.pattern.permute.xlu0 0
    %1050 = vperm.xlu0 %1049, %v843
    %v1051 = vpop.permute.xlu0 %1050
    %1052 = vset.pattern.permute.xlu0 0
    %1053 = vperm.xlu0 %1052, %v844
    %v1054 = vpop.permute.xlu0 %1053
    %1055 = vset.pattern.permute.xlu0 0
    %1056 = vperm.xlu0 %1055, %v845
    %v1057 = vpop.permute.xlu0 %1056
    %1058 = vset.pattern.permute.xlu0 0
    %1059 = vperm.xlu0 %1058, %v846
    %v1060 = vpop.permute.xlu0 %1059
    %1061 = vset.pattern.permute.xlu0 0
    %1062 = vperm.xlu0 %1061, %v847
    %v1063 = vpop.permute.xlu0 %1062
    %1064 = vset.pattern.permute.xlu0 0
    %1065 = vperm.xlu0 %1064, %v848
    %v1066 = vpop.permute.xlu0 %1065
    %1067 = vset.pattern.permute.xlu0 0
    %1068 = vperm.xlu0 %1067, %v849
    %v1069 = vpop.permute.xlu0 %1068
    %1070 = vset.pattern.permute.xlu0 0
    %1071 = vperm.xlu0 %1070, %v850
    %v1072 = vpop.permute.xlu0 %1071
    %1073 = vset.pattern.permute.xlu0 0
    %1074 = vperm.xlu0 %1073, %v851
    %v1075 = vpop.permute.xlu0 %1074
    %1076 = vset.pattern.permute.xlu0 0
    %1077 = vperm.xlu0 %1076, %v852
    %v1078 = vpop.permute.xlu0 %1077
    %1079 = vset.pattern.permute.xlu0 0
    %1080 = vperm.xlu0 %1079, %v853
    %v1081 = vpop.permute.xlu0 %1080
    %1082 = vset.pattern.permute.xlu0 0
    %1083 = vperm.xlu0 %1082, %v854
    %v1084 = vpop.permute.xlu0 %1083
    %1085 = vset.pattern.permute.xlu0 0
    %1086 = vperm.xlu0 %1085, %v855
    %v1087 = vpop.permute.xlu0 %1086
    %1088 = vset.pattern.permute.xlu0 0
    %1089 = vperm.xlu0 %1088, %v856
    %v1090 = vpop.permute.xlu0 %1089
    %1091 = vset.pattern.permute.xlu0 0
    %1092 = vperm.xlu0 %1091, %v857
    %v1093 = vpop.permute.xlu0 %1092
    %1094 = vset.pattern.permute.xlu0 0
    %1095 = vperm.xlu0 %1094, %v858
    %v1096 = vpop.permute.xlu0 %1095
    %1097 = vset.pattern.permute.xlu0 0
    %1098 = vperm.xlu0 %1097, %v859
    %v1099 = vpop.permute.xlu0 %1098
    %1100 = vset.pattern.permute.xlu0 0
    %1101 = vperm.xlu0 %1100, %v860
    %v1102 = vpop.permute.xlu0 %1101
    %1103 = vset.pattern.permute.xlu0 0
    %1104 = vperm.xlu0 %1103, %v861
    %v1105 = vpop.permute.xlu0 %1104
    %1106 = vset.pattern.permute.xlu0 0
    %1107 = vperm.xlu0 %1106, %v862
    %v1108 = vpop.permute.xlu0 %1107
    %1109 = vset.pattern.permute.xlu0 0
    %1110 = vperm.xlu0 %1109, %v863
    %v1111 = vpop.permute.xlu0 %1110
    %1112 = vset.pattern.permute.xlu0 0
    %1113 = vperm.xlu0 %1112, %v864
    %v1114 = vpop.permute.xlu0 %1113
    %1115 = vset.pattern.permute.xlu0 0
    %1116 = vperm.xlu0 %1115, %v865
    %v1117 = vpop.permute.xlu0 %1116
    %1118 = vset.pattern.permute.xlu0 0
    %1119 = vperm.xlu0 %1118, %v866
    %v1120 = vpop.permute.xlu0 %1119
    %1121 = vset.pattern.permute.xlu0 0
    %1122 = vperm.xlu0 %1121, %v867
    %v1123 = vpop.permute.xlu0 %1122
    %v1124 = vlaneseq
    %v1125 = vshrl.u32 %v1124, 7
    %v1126 = vsub.s32 %v89, %v1125
    %v1127 = vrot.slane %v934, %v1126
    %v1128 = vlaneseq
    %v1129 = vshrl.u32 %v1128, 7
    %v1130 = vsub.s32 %v89, %v1129
    %v1131 = vrot.slane %v937, %v1130
    %v1132 = vlaneseq
    %v1133 = vshrl.u32 %v1132, 7
    %v1134 = vsub.s32 %v89, %v1133
    %v1135 = vrot.slane %v940, %v1134
    %v1136 = vlaneseq
    %v1137 = vshrl.u32 %v1136, 7
    %v1138 = vsub.s32 %v89, %v1137
    %v1139 = vrot.slane %v943, %v1138
    %v1140 = vlaneseq
    %v1141 = vshrl.u32 %v1140, 7
    %v1142 = vsub.s32 %v89, %v1141
    %v1143 = vrot.slane %v946, %v1142
    %v1144 = vlaneseq
    %v1145 = vshrl.u32 %v1144, 7
    %v1146 = vsub.s32 %v89, %v1145
    %v1147 = vrot.slane %v949, %v1146
    %v1148 = vlaneseq
    %v1149 = vshrl.u32 %v1148, 7
    %v1150 = vsub.s32 %v89, %v1149
    %v1151 = vrot.slane %v952, %v1150
    %v1152 = vlaneseq
    %v1153 = vshrl.u32 %v1152, 7
    %v1154 = vsub.s32 %v89, %v1153
    %v1155 = vrot.slane %v955, %v1154
    %v1156 = vlaneseq
    %v1157 = vshrl.u32 %v1156, 7
    %v1158 = vsub.s32 %v89, %v1157
    %v1159 = vrot.slane %v958, %v1158
    %v1160 = vlaneseq
    %v1161 = vshrl.u32 %v1160, 7
    %v1162 = vsub.s32 %v89, %v1161
    %v1163 = vrot.slane %v961, %v1162
    %v1164 = vlaneseq
    %v1165 = vshrl.u32 %v1164, 7
    %v1166 = vsub.s32 %v89, %v1165
    %v1167 = vrot.slane %v964, %v1166
    %v1168 = vlaneseq
    %v1169 = vshrl.u32 %v1168, 7
    %v1170 = vsub.s32 %v89, %v1169
    %v1171 = vrot.slane %v967, %v1170
    %v1172 = vlaneseq
    %v1173 = vshrl.u32 %v1172, 7
    %v1174 = vsub.s32 %v89, %v1173
    %v1175 = vrot.slane %v970, %v1174
    %v1176 = vlaneseq
    %v1177 = vshrl.u32 %v1176, 7
    %v1178 = vsub.s32 %v89, %v1177
    %v1179 = vrot.slane %v973, %v1178
    %v1180 = vlaneseq
    %v1181 = vshrl.u32 %v1180, 7
    %v1182 = vsub.s32 %v89, %v1181
    %v1183 = vrot.slane %v976, %v1182
    %v1184 = vlaneseq
    %v1185 = vshrl.u32 %v1184, 7
    %v1186 = vsub.s32 %v89, %v1185
    %v1187 = vrot.slane %v979, %v1186
    %v1188 = vlaneseq
    %v1189 = vshrl.u32 %v1188, 7
    %v1190 = vsub.s32 %v89, %v1189
    %v1191 = vrot.slane %v982, %v1190
    %v1192 = vlaneseq
    %v1193 = vshrl.u32 %v1192, 7
    %v1194 = vsub.s32 %v89, %v1193
    %v1195 = vrot.slane %v985, %v1194
    %v1196 = vlaneseq
    %v1197 = vshrl.u32 %v1196, 7
    %v1198 = vsub.s32 %v89, %v1197
    %v1199 = vrot.slane %v988, %v1198
    %v1200 = vlaneseq
    %v1201 = vshrl.u32 %v1200, 7
    %v1202 = vsub.s32 %v89, %v1201
    %v1203 = vrot.slane %v991, %v1202
    %v1204 = vlaneseq
    %v1205 = vshrl.u32 %v1204, 7
    %v1206 = vsub.s32 %v89, %v1205
    %v1207 = vrot.slane %v994, %v1206
    %v1208 = vlaneseq
    %v1209 = vshrl.u32 %v1208, 7
    %v1210 = vsub.s32 %v89, %v1209
    %v1211 = vrot.slane %v997, %v1210
    %v1212 = vlaneseq
    %v1213 = vshrl.u32 %v1212, 7
    %v1214 = vsub.s32 %v89, %v1213
    %v1215 = vrot.slane %v1000, %v1214
    %v1216 = vlaneseq
    %v1217 = vshrl.u32 %v1216, 7
    %v1218 = vsub.s32 %v89, %v1217
    %v1219 = vrot.slane %v1003, %v1218
    %v1220 = vlaneseq
    %v1221 = vshrl.u32 %v1220, 7
    %v1222 = vsub.s32 %v89, %v1221
    %v1223 = vrot.slane %v1006, %v1222
    %v1224 = vlaneseq
    %v1225 = vshrl.u32 %v1224, 7
    %v1226 = vsub.s32 %v89, %v1225
    %v1227 = vrot.slane %v1009, %v1226
    %v1228 = vlaneseq
    %v1229 = vshrl.u32 %v1228, 7
    %v1230 = vsub.s32 %v89, %v1229
    %v1231 = vrot.slane %v1012, %v1230
    %v1232 = vlaneseq
    %v1233 = vshrl.u32 %v1232, 7
    %v1234 = vsub.s32 %v89, %v1233
    %v1235 = vrot.slane %v1015, %v1234
    %v1236 = vlaneseq
    %v1237 = vshrl.u32 %v1236, 7
    %v1238 = vsub.s32 %v89, %v1237
    %v1239 = vrot.slane %v1018, %v1238
    %v1240 = vlaneseq
    %v1241 = vshrl.u32 %v1240, 7
    %v1242 = vsub.s32 %v89, %v1241
    %v1243 = vrot.slane %v1021, %v1242
    %v1244 = vlaneseq
    %v1245 = vshrl.u32 %v1244, 7
    %v1246 = vsub.s32 %v89, %v1245
    %v1247 = vrot.slane %v1024, %v1246
    %v1248 = vlaneseq
    %v1249 = vshrl.u32 %v1248, 7
    %v1250 = vsub.s32 %v89, %v1249
    %v1251 = vrot.slane %v1027, %v1250
    %v1252 = vlaneseq
    %v1253 = vshrl.u32 %v1252, 7
    %v1254 = vsub.s32 %v89, %v1253
    %v1255 = vrot.slane %v1030, %v1254
    %v1256 = vlaneseq
    %v1257 = vshrl.u32 %v1256, 7
    %v1258 = vsub.s32 %v89, %v1257
    %v1259 = vrot.slane %v1033, %v1258
    %v1260 = vlaneseq
    %v1261 = vshrl.u32 %v1260, 7
    %v1262 = vsub.s32 %v89, %v1261
    %v1263 = vrot.slane %v1036, %v1262
    %v1264 = vlaneseq
    %v1265 = vshrl.u32 %v1264, 7
    %v1266 = vsub.s32 %v89, %v1265
    %v1267 = vrot.slane %v1039, %v1266
    %v1268 = vlaneseq
    %v1269 = vshrl.u32 %v1268, 7
    %v1270 = vsub.s32 %v89, %v1269
    %v1271 = vrot.slane %v1042, %v1270
    %v1272 = vlaneseq
    %v1273 = vshrl.u32 %v1272, 7
    %v1274 = vsub.s32 %v89, %v1273
    %v1275 = vrot.slane %v1045, %v1274
    %v1276 = vlaneseq
    %v1277 = vshrl.u32 %v1276, 7
    %v1278 = vsub.s32 %v89, %v1277
    %v1279 = vrot.slane %v1048, %v1278
    %v1280 = vlaneseq
    %v1281 = vshrl.u32 %v1280, 7
    %v1282 = vsub.s32 %v89, %v1281
    %v1283 = vrot.slane %v1051, %v1282
    %v1284 = vlaneseq
    %v1285 = vshrl.u32 %v1284, 7
    %v1286 = vsub.s32 %v89, %v1285
    %v1287 = vrot.slane %v1054, %v1286
    %v1288 = vlaneseq
    %v1289 = vshrl.u32 %v1288, 7
    %v1290 = vsub.s32 %v89, %v1289
    %v1291 = vrot.slane %v1057, %v1290
    %v1292 = vlaneseq
    %v1293 = vshrl.u32 %v1292, 7
    %v1294 = vsub.s32 %v89, %v1293
    %v1295 = vrot.slane %v1060, %v1294
    %v1296 = vlaneseq
    %v1297 = vshrl.u32 %v1296, 7
    %v1298 = vsub.s32 %v89, %v1297
    %v1299 = vrot.slane %v1063, %v1298
    %v1300 = vlaneseq
    %v1301 = vshrl.u32 %v1300, 7
    %v1302 = vsub.s32 %v89, %v1301
    %v1303 = vrot.slane %v1066, %v1302
    %v1304 = vlaneseq
    %v1305 = vshrl.u32 %v1304, 7
    %v1306 = vsub.s32 %v89, %v1305
    %v1307 = vrot.slane %v1069, %v1306
    %v1308 = vlaneseq
    %v1309 = vshrl.u32 %v1308, 7
    %v1310 = vsub.s32 %v89, %v1309
    %v1311 = vrot.slane %v1072, %v1310
    %v1312 = vlaneseq
    %v1313 = vshrl.u32 %v1312, 7
    %v1314 = vsub.s32 %v89, %v1313
    %v1315 = vrot.slane %v1075, %v1314
    %v1316 = vlaneseq
    %v1317 = vshrl.u32 %v1316, 7
    %v1318 = vsub.s32 %v89, %v1317
    %v1319 = vrot.slane %v1078, %v1318
    %v1320 = vlaneseq
    %v1321 = vshrl.u32 %v1320, 7
    %v1322 = vsub.s32 %v89, %v1321
    %v1323 = vrot.slane %v1081, %v1322
    %v1324 = vlaneseq
    %v1325 = vshrl.u32 %v1324, 7
    %v1326 = vsub.s32 %v89, %v1325
    %v1327 = vrot.slane %v1084, %v1326
    %v1328 = vlaneseq
    %v1329 = vshrl.u32 %v1328, 7
    %v1330 = vsub.s32 %v89, %v1329
    %v1331 = vrot.slane %v1087, %v1330
    %v1332 = vlaneseq
    %v1333 = vshrl.u32 %v1332, 7
    %v1334 = vsub.s32 %v89, %v1333
    %v1335 = vrot.slane %v1090, %v1334
    %v1336 = vlaneseq
    %v1337 = vshrl.u32 %v1336, 7
    %v1338 = vsub.s32 %v89, %v1337
    %v1339 = vrot.slane %v1093, %v1338
    %v1340 = vlaneseq
    %v1341 = vshrl.u32 %v1340, 7
    %v1342 = vsub.s32 %v89, %v1341
    %v1343 = vrot.slane %v1096, %v1342
    %v1344 = vlaneseq
    %v1345 = vshrl.u32 %v1344, 7
    %v1346 = vsub.s32 %v89, %v1345
    %v1347 = vrot.slane %v1099, %v1346
    %v1348 = vlaneseq
    %v1349 = vshrl.u32 %v1348, 7
    %v1350 = vsub.s32 %v89, %v1349
    %v1351 = vrot.slane %v1102, %v1350
    %v1352 = vlaneseq
    %v1353 = vshrl.u32 %v1352, 7
    %v1354 = vsub.s32 %v89, %v1353
    %v1355 = vrot.slane %v1105, %v1354
    %v1356 = vlaneseq
    %v1357 = vshrl.u32 %v1356, 7
    %v1358 = vsub.s32 %v89, %v1357
    %v1359 = vrot.slane %v1108, %v1358
    %v1360 = vlaneseq
    %v1361 = vshrl.u32 %v1360, 7
    %v1362 = vsub.s32 %v89, %v1361
    %v1363 = vrot.slane %v1111, %v1362
    %v1364 = vlaneseq
    %v1365 = vshrl.u32 %v1364, 7
    %v1366 = vsub.s32 %v89, %v1365
    %v1367 = vrot.slane %v1114, %v1366
    %v1368 = vlaneseq
    %v1369 = vshrl.u32 %v1368, 7
    %v1370 = vsub.s32 %v89, %v1369
    %v1371 = vrot.slane %v1117, %v1370
    %v1372 = vlaneseq
    %v1373 = vshrl.u32 %v1372, 7
    %v1374 = vsub.s32 %v89, %v1373
    %v1375 = vrot.slane %v1120, %v1374
    %v1376 = vlaneseq
    %v1377 = vshrl.u32 %v1376, 7
    %v1378 = vsub.s32 %v89, %v1377
    %v1379 = vrot.slane %v1123, %v1378
    %vm1380 = vcmask 1041409
    %v1381 = vsel %vm1380, %v1131, %v1127
    %vm1382 = vcmask 1042434
    %v1383 = vsel %vm1382, %v1135, %v1381
    %vm1384 = vcmask 1043459
    %v1385 = vsel %vm1384, %v1139, %v1383
    %vm1386 = vcmask 1044484
    %v1387 = vsel %vm1386, %v1143, %v1385
    %vm1388 = vcmask 1045509
    %v1389 = vsel %vm1388, %v1147, %v1387
    %vm1390 = vcmask 1046534
    %v1391 = vsel %vm1390, %v1151, %v1389
    %vm1392 = vcmask 1047559
    %v1393 = vsel %vm1392, %v1155, %v1391
    %v1394 = vsel %vm1380, %v1163, %v1159
    %v1395 = vsel %vm1382, %v1167, %v1394
    %v1396 = vsel %vm1384, %v1171, %v1395
    %v1397 = vsel %vm1386, %v1175, %v1396
    %v1398 = vsel %vm1388, %v1179, %v1397
    %v1399 = vsel %vm1390, %v1183, %v1398
    %v1400 = vsel %vm1392, %v1187, %v1399
    %v1401 = vsel %vm1380, %v1195, %v1191
    %v1402 = vsel %vm1382, %v1199, %v1401
    %v1403 = vsel %vm1384, %v1203, %v1402
    %v1404 = vsel %vm1386, %v1207, %v1403
    %v1405 = vsel %vm1388, %v1211, %v1404
    %v1406 = vsel %vm1390, %v1215, %v1405
    %v1407 = vsel %vm1392, %v1219, %v1406
    %v1408 = vsel %vm1380, %v1227, %v1223
    %v1409 = vsel %vm1382, %v1231, %v1408
    %v1410 = vsel %vm1384, %v1235, %v1409
    %v1411 = vsel %vm1386, %v1239, %v1410
    %v1412 = vsel %vm1388, %v1243, %v1411
    %v1413 = vsel %vm1390, %v1247, %v1412
    %v1414 = vsel %vm1392, %v1251, %v1413
    %v1415 = vsel %vm1380, %v1259, %v1255
    %v1416 = vsel %vm1382, %v1263, %v1415
    %v1417 = vsel %vm1384, %v1267, %v1416
    %v1418 = vsel %vm1386, %v1271, %v1417
    %v1419 = vsel %vm1388, %v1275, %v1418
    %v1420 = vsel %vm1390, %v1279, %v1419
    %v1421 = vsel %vm1392, %v1283, %v1420
    %v1422 = vsel %vm1380, %v1291, %v1287
    %v1423 = vsel %vm1382, %v1295, %v1422
    %v1424 = vsel %vm1384, %v1299, %v1423
    %v1425 = vsel %vm1386, %v1303, %v1424
    %v1426 = vsel %vm1388, %v1307, %v1425
    %v1427 = vsel %vm1390, %v1311, %v1426
    %v1428 = vsel %vm1392, %v1315, %v1427
    %v1429 = vsel %vm1380, %v1323, %v1319
    %v1430 = vsel %vm1382, %v1327, %v1429
    %v1431 = vsel %vm1384, %v1331, %v1430
    %v1432 = vsel %vm1386, %v1335, %v1431
    %v1433 = vsel %vm1388, %v1339, %v1432
    %v1434 = vsel %vm1390, %v1343, %v1433
    %v1435 = vsel %vm1392, %v1347, %v1434
    %v1436 = vsel %vm1380, %v1355, %v1351
    %v1437 = vsel %vm1382, %v1359, %v1436
    %v1438 = vsel %vm1384, %v1363, %v1437
    %v1439 = vsel %vm1386, %v1367, %v1438
    %v1440 = vsel %vm1388, %v1371, %v1439
    %v1441 = vsel %vm1390, %v1375, %v1440
    %v1442 = vsel %vm1392, %v1379, %v1441
    %v1451 = vsel %vm101, %v1393, 0.0
    %1452 = vadd.xlane.f32.xlu0 %v1451
    %v1453 = vpop.xlane.xlu0 %1452
    %v1454 = vsel %vm101, %v1400, 0.0
    %1455 = vadd.xlane.f32.xlu0 %v1454
    %v1456 = vpop.xlane.xlu0 %1455
    %v1457 = vsel %vm101, %v1407, 0.0
    %1458 = vadd.xlane.f32.xlu0 %v1457
    %v1459 = vpop.xlane.xlu0 %1458
    %v1460 = vsel %vm101, %v1414, 0.0
    %1461 = vadd.xlane.f32.xlu0 %v1460
    %v1462 = vpop.xlane.xlu0 %1461
    %v1463 = vsel %vm101, %v1421, 0.0
    %1464 = vadd.xlane.f32.xlu0 %v1463
    %v1465 = vpop.xlane.xlu0 %1464
    %v1466 = vsel %vm101, %v1428, 0.0
    %1467 = vadd.xlane.f32.xlu0 %v1466
    %v1468 = vpop.xlane.xlu0 %1467
    %v1469 = vsel %vm101, %v1435, 0.0
    %1470 = vadd.xlane.f32.xlu0 %v1469
    %v1471 = vpop.xlane.xlu0 %1470
    %v1472 = vsel %vm101, %v1442, 0.0
    %1473 = vadd.xlane.f32.xlu0 %v1472
    %v1474 = vpop.xlane.xlu0 %1473
    %v1476 = vlaneseq
    %v1477 = vshrl.u32 %v1476, 7
    %v1478 = vsub.s32 0, %v1477
    %v1479 = vrot.slane %v85, %v1478
    %1481 = vbcast.lane.b32.xlu0 %v1479, 256
    %v1482 = vpop.permute.xlu0 %1481
    %v1483 = vlaneseq
    %v1484 = vshrl.u32 %v1483, 7
    %v1485 = vsub.s32 1, %v1484
    %v1486 = vrot.slane %v85, %v1485
    %1488 = vbcast.lane.b32.xlu0 %v1486, 256
    %v1489 = vpop.permute.xlu0 %1488
    %v1490 = vlaneseq
    %v1491 = vshrl.u32 %v1490, 7
    %v1492 = vsub.s32 2, %v1491
    %v1493 = vrot.slane %v85, %v1492
    %1495 = vbcast.lane.b32.xlu0 %v1493, 256
    %v1496 = vpop.permute.xlu0 %1495
    %v1497 = vlaneseq
    %v1498 = vshrl.u32 %v1497, 7
    %v1499 = vsub.s32 3, %v1498
    %v1500 = vrot.slane %v85, %v1499
    %1502 = vbcast.lane.b32.xlu0 %v1500, 256
    %v1503 = vpop.permute.xlu0 %1502
    %v1504 = vlaneseq
    %v1505 = vshrl.u32 %v1504, 7
    %v1506 = vsub.s32 4, %v1505
    %v1507 = vrot.slane %v85, %v1506
    %1509 = vbcast.lane.b32.xlu0 %v1507, 256
    %v1510 = vpop.permute.xlu0 %1509
    %v1511 = vlaneseq
    %v1512 = vshrl.u32 %v1511, 7
    %v1513 = vsub.s32 5, %v1512
    %v1514 = vrot.slane %v85, %v1513
    %1516 = vbcast.lane.b32.xlu0 %v1514, 256
    %v1517 = vpop.permute.xlu0 %1516
    %v1518 = vlaneseq
    %v1519 = vshrl.u32 %v1518, 7
    %v1520 = vsub.s32 6, %v1519
    %v1521 = vrot.slane %v85, %v1520
    %1523 = vbcast.lane.b32.xlu0 %v1521, 256
    %v1524 = vpop.permute.xlu0 %1523
    %v1525 = vlaneseq
    %v1526 = vshrl.u32 %v1525, 7
    %v1527 = vsub.s32 7, %v1526
    %v1528 = vrot.slane %v85, %v1527
    %1530 = vbcast.lane.b32.xlu0 %v1528, 256
    %v1531 = vpop.permute.xlu0 %1530
    %v1540 = vadd.f32 %v1453, %v1482
    %v1541 = vadd.f32 %v1456, %v1489
    %v1542 = vadd.f32 %v1459, %v1496
    %v1543 = vadd.f32 %v1462, %v1503
    %v1544 = vadd.f32 %v1465, %v1510
    %v1545 = vadd.f32 %v1468, %v1517
    %v1546 = vadd.f32 %v1471, %v1524
    %v1547 = vadd.f32 %v1474, %v1531
    %v1548 = vtanh.pop %v1540
    %v1549 = vtanh.pop %v1541
    %v1550 = vtanh.pop %v1542
    %v1551 = vtanh.pop %v1543
    %v1552 = vtanh.pop %v1544
    %v1553 = vtanh.pop %v1545
    %v1554 = vtanh.pop %v1546
    %v1555 = vtanh.pop %v1547
    %v1564 = vlaneseq
    %v1565 = vshrl.u32 %v1564, 7
    %v1566 = vsub.s32 0, %v1565
    %v1567 = vrot.slane %v69, %v1566
    %1569 = vbcast.lane.b32.xlu0 %v1567, 256
    %v1570 = vpop.permute.xlu0 %1569
    %v1571 = vlaneseq
    %v1572 = vshrl.u32 %v1571, 7
    %v1573 = vsub.s32 1, %v1572
    %v1574 = vrot.slane %v69, %v1573
    %1576 = vbcast.lane.b32.xlu0 %v1574, 256
    %v1577 = vpop.permute.xlu0 %1576
    %v1578 = vlaneseq
    %v1579 = vshrl.u32 %v1578, 7
    %v1580 = vsub.s32 2, %v1579
    %v1581 = vrot.slane %v69, %v1580
    %1583 = vbcast.lane.b32.xlu0 %v1581, 256
    %v1584 = vpop.permute.xlu0 %1583
    %v1585 = vlaneseq
    %v1586 = vshrl.u32 %v1585, 7
    %v1587 = vsub.s32 3, %v1586
    %v1588 = vrot.slane %v69, %v1587
    %1590 = vbcast.lane.b32.xlu0 %v1588, 256
    %v1591 = vpop.permute.xlu0 %1590
    %v1592 = vlaneseq
    %v1593 = vshrl.u32 %v1592, 7
    %v1594 = vsub.s32 4, %v1593
    %v1595 = vrot.slane %v69, %v1594
    %1597 = vbcast.lane.b32.xlu0 %v1595, 256
    %v1598 = vpop.permute.xlu0 %1597
    %v1599 = vlaneseq
    %v1600 = vshrl.u32 %v1599, 7
    %v1601 = vsub.s32 5, %v1600
    %v1602 = vrot.slane %v69, %v1601
    %1604 = vbcast.lane.b32.xlu0 %v1602, 256
    %v1605 = vpop.permute.xlu0 %1604
    %v1606 = vlaneseq
    %v1607 = vshrl.u32 %v1606, 7
    %v1608 = vsub.s32 6, %v1607
    %v1609 = vrot.slane %v69, %v1608
    %1611 = vbcast.lane.b32.xlu0 %v1609, 256
    %v1612 = vpop.permute.xlu0 %1611
    %v1613 = vlaneseq
    %v1614 = vshrl.u32 %v1613, 7
    %v1615 = vsub.s32 7, %v1614
    %v1616 = vrot.slane %v69, %v1615
    %1618 = vbcast.lane.b32.xlu0 %v1616, 256
    %v1619 = vpop.permute.xlu0 %1618
    %v1620 = vlaneseq
    %v1621 = vshrl.u32 %v1620, 7
    %v1622 = vsub.s32 0, %v1621
    %v1623 = vrot.slane %v70, %v1622
    %1625 = vbcast.lane.b32.xlu0 %v1623, 256
    %v1626 = vpop.permute.xlu0 %1625
    %v1627 = vlaneseq
    %v1628 = vshrl.u32 %v1627, 7
    %v1629 = vsub.s32 1, %v1628
    %v1630 = vrot.slane %v70, %v1629
    %1632 = vbcast.lane.b32.xlu0 %v1630, 256
    %v1633 = vpop.permute.xlu0 %1632
    %v1634 = vlaneseq
    %v1635 = vshrl.u32 %v1634, 7
    %v1636 = vsub.s32 2, %v1635
    %v1637 = vrot.slane %v70, %v1636
    %1639 = vbcast.lane.b32.xlu0 %v1637, 256
    %v1640 = vpop.permute.xlu0 %1639
    %v1641 = vlaneseq
    %v1642 = vshrl.u32 %v1641, 7
    %v1643 = vsub.s32 3, %v1642
    %v1644 = vrot.slane %v70, %v1643
    %1646 = vbcast.lane.b32.xlu0 %v1644, 256
    %v1647 = vpop.permute.xlu0 %1646
    %v1648 = vlaneseq
    %v1649 = vshrl.u32 %v1648, 7
    %v1650 = vsub.s32 4, %v1649
    %v1651 = vrot.slane %v70, %v1650
    %1653 = vbcast.lane.b32.xlu0 %v1651, 256
    %v1654 = vpop.permute.xlu0 %1653
    %v1655 = vlaneseq
    %v1656 = vshrl.u32 %v1655, 7
    %v1657 = vsub.s32 5, %v1656
    %v1658 = vrot.slane %v70, %v1657
    %1660 = vbcast.lane.b32.xlu0 %v1658, 256
    %v1661 = vpop.permute.xlu0 %1660
    %v1662 = vlaneseq
    %v1663 = vshrl.u32 %v1662, 7
    %v1664 = vsub.s32 6, %v1663
    %v1665 = vrot.slane %v70, %v1664
    %1667 = vbcast.lane.b32.xlu0 %v1665, 256
    %v1668 = vpop.permute.xlu0 %1667
    %v1669 = vlaneseq
    %v1670 = vshrl.u32 %v1669, 7
    %v1671 = vsub.s32 7, %v1670
    %v1672 = vrot.slane %v70, %v1671
    %1674 = vbcast.lane.b32.xlu0 %v1672, 256
    %v1675 = vpop.permute.xlu0 %1674
    %v1676 = vlaneseq
    %v1677 = vshrl.u32 %v1676, 7
    %v1678 = vsub.s32 0, %v1677
    %v1679 = vrot.slane %v71, %v1678
    %1681 = vbcast.lane.b32.xlu0 %v1679, 256
    %v1682 = vpop.permute.xlu0 %1681
    %v1683 = vlaneseq
    %v1684 = vshrl.u32 %v1683, 7
    %v1685 = vsub.s32 1, %v1684
    %v1686 = vrot.slane %v71, %v1685
    %1688 = vbcast.lane.b32.xlu0 %v1686, 256
    %v1689 = vpop.permute.xlu0 %1688
    %v1690 = vlaneseq
    %v1691 = vshrl.u32 %v1690, 7
    %v1692 = vsub.s32 2, %v1691
    %v1693 = vrot.slane %v71, %v1692
    %1695 = vbcast.lane.b32.xlu0 %v1693, 256
    %v1696 = vpop.permute.xlu0 %1695
    %v1697 = vlaneseq
    %v1698 = vshrl.u32 %v1697, 7
    %v1699 = vsub.s32 3, %v1698
    %v1700 = vrot.slane %v71, %v1699
    %1702 = vbcast.lane.b32.xlu0 %v1700, 256
    %v1703 = vpop.permute.xlu0 %1702
    %v1704 = vlaneseq
    %v1705 = vshrl.u32 %v1704, 7
    %v1706 = vsub.s32 4, %v1705
    %v1707 = vrot.slane %v71, %v1706
    %1709 = vbcast.lane.b32.xlu0 %v1707, 256
    %v1710 = vpop.permute.xlu0 %1709
    %v1711 = vlaneseq
    %v1712 = vshrl.u32 %v1711, 7
    %v1713 = vsub.s32 5, %v1712
    %v1714 = vrot.slane %v71, %v1713
    %1716 = vbcast.lane.b32.xlu0 %v1714, 256
    %v1717 = vpop.permute.xlu0 %1716
    %v1718 = vlaneseq
    %v1719 = vshrl.u32 %v1718, 7
    %v1720 = vsub.s32 6, %v1719
    %v1721 = vrot.slane %v71, %v1720
    %1723 = vbcast.lane.b32.xlu0 %v1721, 256
    %v1724 = vpop.permute.xlu0 %1723
    %v1725 = vlaneseq
    %v1726 = vshrl.u32 %v1725, 7
    %v1727 = vsub.s32 7, %v1726
    %v1728 = vrot.slane %v71, %v1727
    %1730 = vbcast.lane.b32.xlu0 %v1728, 256
    %v1731 = vpop.permute.xlu0 %1730
    %v1732 = vlaneseq
    %v1733 = vshrl.u32 %v1732, 7
    %v1734 = vsub.s32 0, %v1733
    %v1735 = vrot.slane %v72, %v1734
    %1737 = vbcast.lane.b32.xlu0 %v1735, 256
    %v1738 = vpop.permute.xlu0 %1737
    %v1739 = vlaneseq
    %v1740 = vshrl.u32 %v1739, 7
    %v1741 = vsub.s32 1, %v1740
    %v1742 = vrot.slane %v72, %v1741
    %1744 = vbcast.lane.b32.xlu0 %v1742, 256
    %v1745 = vpop.permute.xlu0 %1744
    %v1746 = vlaneseq
    %v1747 = vshrl.u32 %v1746, 7
    %v1748 = vsub.s32 2, %v1747
    %v1749 = vrot.slane %v72, %v1748
    %1751 = vbcast.lane.b32.xlu0 %v1749, 256
    %v1752 = vpop.permute.xlu0 %1751
    %v1753 = vlaneseq
    %v1754 = vshrl.u32 %v1753, 7
    %v1755 = vsub.s32 3, %v1754
    %v1756 = vrot.slane %v72, %v1755
    %1758 = vbcast.lane.b32.xlu0 %v1756, 256
    %v1759 = vpop.permute.xlu0 %1758
    %v1760 = vlaneseq
    %v1761 = vshrl.u32 %v1760, 7
    %v1762 = vsub.s32 4, %v1761
    %v1763 = vrot.slane %v72, %v1762
    %1765 = vbcast.lane.b32.xlu0 %v1763, 256
    %v1766 = vpop.permute.xlu0 %1765
    %v1767 = vlaneseq
    %v1768 = vshrl.u32 %v1767, 7
    %v1769 = vsub.s32 5, %v1768
    %v1770 = vrot.slane %v72, %v1769
    %1772 = vbcast.lane.b32.xlu0 %v1770, 256
    %v1773 = vpop.permute.xlu0 %1772
    %v1774 = vlaneseq
    %v1775 = vshrl.u32 %v1774, 7
    %v1776 = vsub.s32 6, %v1775
    %v1777 = vrot.slane %v72, %v1776
    %1779 = vbcast.lane.b32.xlu0 %v1777, 256
    %v1780 = vpop.permute.xlu0 %1779
    %v1781 = vlaneseq
    %v1782 = vshrl.u32 %v1781, 7
    %v1783 = vsub.s32 7, %v1782
    %v1784 = vrot.slane %v72, %v1783
    %1786 = vbcast.lane.b32.xlu0 %v1784, 256
    %v1787 = vpop.permute.xlu0 %1786
    %v1788 = vlaneseq
    %v1789 = vshrl.u32 %v1788, 7
    %v1790 = vsub.s32 0, %v1789
    %v1791 = vrot.slane %v73, %v1790
    %1793 = vbcast.lane.b32.xlu0 %v1791, 256
    %v1794 = vpop.permute.xlu0 %1793
    %v1795 = vlaneseq
    %v1796 = vshrl.u32 %v1795, 7
    %v1797 = vsub.s32 1, %v1796
    %v1798 = vrot.slane %v73, %v1797
    %1800 = vbcast.lane.b32.xlu0 %v1798, 256
    %v1801 = vpop.permute.xlu0 %1800
    %v1802 = vlaneseq
    %v1803 = vshrl.u32 %v1802, 7
    %v1804 = vsub.s32 2, %v1803
    %v1805 = vrot.slane %v73, %v1804
    %1807 = vbcast.lane.b32.xlu0 %v1805, 256
    %v1808 = vpop.permute.xlu0 %1807
    %v1809 = vlaneseq
    %v1810 = vshrl.u32 %v1809, 7
    %v1811 = vsub.s32 3, %v1810
    %v1812 = vrot.slane %v73, %v1811
    %1814 = vbcast.lane.b32.xlu0 %v1812, 256
    %v1815 = vpop.permute.xlu0 %1814
    %v1816 = vlaneseq
    %v1817 = vshrl.u32 %v1816, 7
    %v1818 = vsub.s32 4, %v1817
    %v1819 = vrot.slane %v73, %v1818
    %1821 = vbcast.lane.b32.xlu0 %v1819, 256
    %v1822 = vpop.permute.xlu0 %1821
    %v1823 = vlaneseq
    %v1824 = vshrl.u32 %v1823, 7
    %v1825 = vsub.s32 5, %v1824
    %v1826 = vrot.slane %v73, %v1825
    %1828 = vbcast.lane.b32.xlu0 %v1826, 256
    %v1829 = vpop.permute.xlu0 %1828
    %v1830 = vlaneseq
    %v1831 = vshrl.u32 %v1830, 7
    %v1832 = vsub.s32 6, %v1831
    %v1833 = vrot.slane %v73, %v1832
    %1835 = vbcast.lane.b32.xlu0 %v1833, 256
    %v1836 = vpop.permute.xlu0 %1835
    %v1837 = vlaneseq
    %v1838 = vshrl.u32 %v1837, 7
    %v1839 = vsub.s32 7, %v1838
    %v1840 = vrot.slane %v73, %v1839
    %1842 = vbcast.lane.b32.xlu0 %v1840, 256
    %v1843 = vpop.permute.xlu0 %1842
    %v1844 = vlaneseq
    %v1845 = vshrl.u32 %v1844, 7
    %v1846 = vsub.s32 0, %v1845
    %v1847 = vrot.slane %v74, %v1846
    %1849 = vbcast.lane.b32.xlu0 %v1847, 256
    %v1850 = vpop.permute.xlu0 %1849
    %v1851 = vlaneseq
    %v1852 = vshrl.u32 %v1851, 7
    %v1853 = vsub.s32 1, %v1852
    %v1854 = vrot.slane %v74, %v1853
    %1856 = vbcast.lane.b32.xlu0 %v1854, 256
    %v1857 = vpop.permute.xlu0 %1856
    %v1858 = vlaneseq
    %v1859 = vshrl.u32 %v1858, 7
    %v1860 = vsub.s32 2, %v1859
    %v1861 = vrot.slane %v74, %v1860
    %1863 = vbcast.lane.b32.xlu0 %v1861, 256
    %v1864 = vpop.permute.xlu0 %1863
    %v1865 = vlaneseq
    %v1866 = vshrl.u32 %v1865, 7
    %v1867 = vsub.s32 3, %v1866
    %v1868 = vrot.slane %v74, %v1867
    %1870 = vbcast.lane.b32.xlu0 %v1868, 256
    %v1871 = vpop.permute.xlu0 %1870
    %v1872 = vlaneseq
    %v1873 = vshrl.u32 %v1872, 7
    %v1874 = vsub.s32 4, %v1873
    %v1875 = vrot.slane %v74, %v1874
    %1877 = vbcast.lane.b32.xlu0 %v1875, 256
    %v1878 = vpop.permute.xlu0 %1877
    %v1879 = vlaneseq
    %v1880 = vshrl.u32 %v1879, 7
    %v1881 = vsub.s32 5, %v1880
    %v1882 = vrot.slane %v74, %v1881
    %1884 = vbcast.lane.b32.xlu0 %v1882, 256
    %v1885 = vpop.permute.xlu0 %1884
    %v1886 = vlaneseq
    %v1887 = vshrl.u32 %v1886, 7
    %v1888 = vsub.s32 6, %v1887
    %v1889 = vrot.slane %v74, %v1888
    %1891 = vbcast.lane.b32.xlu0 %v1889, 256
    %v1892 = vpop.permute.xlu0 %1891
    %v1893 = vlaneseq
    %v1894 = vshrl.u32 %v1893, 7
    %v1895 = vsub.s32 7, %v1894
    %v1896 = vrot.slane %v74, %v1895
    %1898 = vbcast.lane.b32.xlu0 %v1896, 256
    %v1899 = vpop.permute.xlu0 %1898
    %v1900 = vlaneseq
    %v1901 = vshrl.u32 %v1900, 7
    %v1902 = vsub.s32 0, %v1901
    %v1903 = vrot.slane %v75, %v1902
    %1905 = vbcast.lane.b32.xlu0 %v1903, 256
    %v1906 = vpop.permute.xlu0 %1905
    %v1907 = vlaneseq
    %v1908 = vshrl.u32 %v1907, 7
    %v1909 = vsub.s32 1, %v1908
    %v1910 = vrot.slane %v75, %v1909
    %1912 = vbcast.lane.b32.xlu0 %v1910, 256
    %v1913 = vpop.permute.xlu0 %1912
    %v1914 = vlaneseq
    %v1915 = vshrl.u32 %v1914, 7
    %v1916 = vsub.s32 2, %v1915
    %v1917 = vrot.slane %v75, %v1916
    %1919 = vbcast.lane.b32.xlu0 %v1917, 256
    %v1920 = vpop.permute.xlu0 %1919
    %v1921 = vlaneseq
    %v1922 = vshrl.u32 %v1921, 7
    %v1923 = vsub.s32 3, %v1922
    %v1924 = vrot.slane %v75, %v1923
    %1926 = vbcast.lane.b32.xlu0 %v1924, 256
    %v1927 = vpop.permute.xlu0 %1926
    %v1928 = vlaneseq
    %v1929 = vshrl.u32 %v1928, 7
    %v1930 = vsub.s32 4, %v1929
    %v1931 = vrot.slane %v75, %v1930
    %1933 = vbcast.lane.b32.xlu0 %v1931, 256
    %v1934 = vpop.permute.xlu0 %1933
    %v1935 = vlaneseq
    %v1936 = vshrl.u32 %v1935, 7
    %v1937 = vsub.s32 5, %v1936
    %v1938 = vrot.slane %v75, %v1937
    %1940 = vbcast.lane.b32.xlu0 %v1938, 256
    %v1941 = vpop.permute.xlu0 %1940
    %v1942 = vlaneseq
    %v1943 = vshrl.u32 %v1942, 7
    %v1944 = vsub.s32 6, %v1943
    %v1945 = vrot.slane %v75, %v1944
    %1947 = vbcast.lane.b32.xlu0 %v1945, 256
    %v1948 = vpop.permute.xlu0 %1947
    %v1949 = vlaneseq
    %v1950 = vshrl.u32 %v1949, 7
    %v1951 = vsub.s32 7, %v1950
    %v1952 = vrot.slane %v75, %v1951
    %1954 = vbcast.lane.b32.xlu0 %v1952, 256
    %v1955 = vpop.permute.xlu0 %1954
    %v1956 = vlaneseq
    %v1957 = vshrl.u32 %v1956, 7
    %v1958 = vsub.s32 0, %v1957
    %v1959 = vrot.slane %v76, %v1958
    %1961 = vbcast.lane.b32.xlu0 %v1959, 256
    %v1962 = vpop.permute.xlu0 %1961
    %v1963 = vlaneseq
    %v1964 = vshrl.u32 %v1963, 7
    %v1965 = vsub.s32 1, %v1964
    %v1966 = vrot.slane %v76, %v1965
    %1968 = vbcast.lane.b32.xlu0 %v1966, 256
    %v1969 = vpop.permute.xlu0 %1968
    %v1970 = vlaneseq
    %v1971 = vshrl.u32 %v1970, 7
    %v1972 = vsub.s32 2, %v1971
    %v1973 = vrot.slane %v76, %v1972
    %1975 = vbcast.lane.b32.xlu0 %v1973, 256
    %v1976 = vpop.permute.xlu0 %1975
    %v1977 = vlaneseq
    %v1978 = vshrl.u32 %v1977, 7
    %v1979 = vsub.s32 3, %v1978
    %v1980 = vrot.slane %v76, %v1979
    %1982 = vbcast.lane.b32.xlu0 %v1980, 256
    %v1983 = vpop.permute.xlu0 %1982
    %v1984 = vlaneseq
    %v1985 = vshrl.u32 %v1984, 7
    %v1986 = vsub.s32 4, %v1985
    %v1987 = vrot.slane %v76, %v1986
    %1989 = vbcast.lane.b32.xlu0 %v1987, 256
    %v1990 = vpop.permute.xlu0 %1989
    %v1991 = vlaneseq
    %v1992 = vshrl.u32 %v1991, 7
    %v1993 = vsub.s32 5, %v1992
    %v1994 = vrot.slane %v76, %v1993
    %1996 = vbcast.lane.b32.xlu0 %v1994, 256
    %v1997 = vpop.permute.xlu0 %1996
    %v1998 = vlaneseq
    %v1999 = vshrl.u32 %v1998, 7
    %v2000 = vsub.s32 6, %v1999
    %v2001 = vrot.slane %v76, %v2000
    %2003 = vbcast.lane.b32.xlu0 %v2001, 256
    %v2004 = vpop.permute.xlu0 %2003
    %v2005 = vlaneseq
    %v2006 = vshrl.u32 %v2005, 7
    %v2007 = vsub.s32 7, %v2006
    %v2008 = vrot.slane %v76, %v2007
    %2010 = vbcast.lane.b32.xlu0 %v2008, 256
    %v2011 = vpop.permute.xlu0 %2010
    %v2076 = vmul.f32 %v1548, %v1570
    %v2077 = vmul.f32 %v1548, %v1577
    %v2078 = vmul.f32 %v1548, %v1584
    %v2079 = vmul.f32 %v1548, %v1591
    %v2080 = vmul.f32 %v1548, %v1598
    %v2081 = vmul.f32 %v1548, %v1605
    %v2082 = vmul.f32 %v1548, %v1612
    %v2083 = vmul.f32 %v1548, %v1619
    %v2084 = vmul.f32 %v1549, %v1626
    %v2085 = vmul.f32 %v1549, %v1633
    %v2086 = vmul.f32 %v1549, %v1640
    %v2087 = vmul.f32 %v1549, %v1647
    %v2088 = vmul.f32 %v1549, %v1654
    %v2089 = vmul.f32 %v1549, %v1661
    %v2090 = vmul.f32 %v1549, %v1668
    %v2091 = vmul.f32 %v1549, %v1675
    %v2092 = vmul.f32 %v1550, %v1682
    %v2093 = vmul.f32 %v1550, %v1689
    %v2094 = vmul.f32 %v1550, %v1696
    %v2095 = vmul.f32 %v1550, %v1703
    %v2096 = vmul.f32 %v1550, %v1710
    %v2097 = vmul.f32 %v1550, %v1717
    %v2098 = vmul.f32 %v1550, %v1724
    %v2099 = vmul.f32 %v1550, %v1731
    %v2100 = vmul.f32 %v1551, %v1738
    %v2101 = vmul.f32 %v1551, %v1745
    %v2102 = vmul.f32 %v1551, %v1752
    %v2103 = vmul.f32 %v1551, %v1759
    %v2104 = vmul.f32 %v1551, %v1766
    %v2105 = vmul.f32 %v1551, %v1773
    %v2106 = vmul.f32 %v1551, %v1780
    %v2107 = vmul.f32 %v1551, %v1787
    %v2108 = vmul.f32 %v1552, %v1794
    %v2109 = vmul.f32 %v1552, %v1801
    %v2110 = vmul.f32 %v1552, %v1808
    %v2111 = vmul.f32 %v1552, %v1815
    %v2112 = vmul.f32 %v1552, %v1822
    %v2113 = vmul.f32 %v1552, %v1829
    %v2114 = vmul.f32 %v1552, %v1836
    %v2115 = vmul.f32 %v1552, %v1843
    %v2116 = vmul.f32 %v1553, %v1850
    %v2117 = vmul.f32 %v1553, %v1857
    %v2118 = vmul.f32 %v1553, %v1864
    %v2119 = vmul.f32 %v1553, %v1871
    %v2120 = vmul.f32 %v1553, %v1878
    %v2121 = vmul.f32 %v1553, %v1885
    %v2122 = vmul.f32 %v1553, %v1892
    %v2123 = vmul.f32 %v1553, %v1899
    %v2124 = vmul.f32 %v1554, %v1906
    %v2125 = vmul.f32 %v1554, %v1913
    %v2126 = vmul.f32 %v1554, %v1920
    %v2127 = vmul.f32 %v1554, %v1927
    %v2128 = vmul.f32 %v1554, %v1934
    %v2129 = vmul.f32 %v1554, %v1941
    %v2130 = vmul.f32 %v1554, %v1948
    %v2131 = vmul.f32 %v1554, %v1955
    %v2132 = vmul.f32 %v1555, %v1962
    %v2133 = vmul.f32 %v1555, %v1969
    %v2134 = vmul.f32 %v1555, %v1976
    %v2135 = vmul.f32 %v1555, %v1983
    %v2136 = vmul.f32 %v1555, %v1990
    %v2137 = vmul.f32 %v1555, %v1997
    %v2138 = vmul.f32 %v1555, %v2004
    %v2139 = vmul.f32 %v1555, %v2011
    %2204 = vset.pattern.permute.xlu0 0
    %2205 = vperm.xlu0 %2204, %v2076
    %v2206 = vpop.permute.xlu0 %2205
    %2207 = vset.pattern.permute.xlu0 0
    %2208 = vperm.xlu0 %2207, %v2077
    %v2209 = vpop.permute.xlu0 %2208
    %2210 = vset.pattern.permute.xlu0 0
    %2211 = vperm.xlu0 %2210, %v2078
    %v2212 = vpop.permute.xlu0 %2211
    %2213 = vset.pattern.permute.xlu0 0
    %2214 = vperm.xlu0 %2213, %v2079
    %v2215 = vpop.permute.xlu0 %2214
    %2216 = vset.pattern.permute.xlu0 0
    %2217 = vperm.xlu0 %2216, %v2080
    %v2218 = vpop.permute.xlu0 %2217
    %2219 = vset.pattern.permute.xlu0 0
    %2220 = vperm.xlu0 %2219, %v2081
    %v2221 = vpop.permute.xlu0 %2220
    %2222 = vset.pattern.permute.xlu0 0
    %2223 = vperm.xlu0 %2222, %v2082
    %v2224 = vpop.permute.xlu0 %2223
    %2225 = vset.pattern.permute.xlu0 0
    %2226 = vperm.xlu0 %2225, %v2083
    %v2227 = vpop.permute.xlu0 %2226
    %2228 = vset.pattern.permute.xlu0 0
    %2229 = vperm.xlu0 %2228, %v2084
    %v2230 = vpop.permute.xlu0 %2229
    %2231 = vset.pattern.permute.xlu0 0
    %2232 = vperm.xlu0 %2231, %v2085
    %v2233 = vpop.permute.xlu0 %2232
    %2234 = vset.pattern.permute.xlu0 0
    %2235 = vperm.xlu0 %2234, %v2086
    %v2236 = vpop.permute.xlu0 %2235
    %2237 = vset.pattern.permute.xlu0 0
    %2238 = vperm.xlu0 %2237, %v2087
    %v2239 = vpop.permute.xlu0 %2238
    %2240 = vset.pattern.permute.xlu0 0
    %2241 = vperm.xlu0 %2240, %v2088
    %v2242 = vpop.permute.xlu0 %2241
    %2243 = vset.pattern.permute.xlu0 0
    %2244 = vperm.xlu0 %2243, %v2089
    %v2245 = vpop.permute.xlu0 %2244
    %2246 = vset.pattern.permute.xlu0 0
    %2247 = vperm.xlu0 %2246, %v2090
    %v2248 = vpop.permute.xlu0 %2247
    %2249 = vset.pattern.permute.xlu0 0
    %2250 = vperm.xlu0 %2249, %v2091
    %v2251 = vpop.permute.xlu0 %2250
    %2252 = vset.pattern.permute.xlu0 0
    %2253 = vperm.xlu0 %2252, %v2092
    %v2254 = vpop.permute.xlu0 %2253
    %2255 = vset.pattern.permute.xlu0 0
    %2256 = vperm.xlu0 %2255, %v2093
    %v2257 = vpop.permute.xlu0 %2256
    %2258 = vset.pattern.permute.xlu0 0
    %2259 = vperm.xlu0 %2258, %v2094
    %v2260 = vpop.permute.xlu0 %2259
    %2261 = vset.pattern.permute.xlu0 0
    %2262 = vperm.xlu0 %2261, %v2095
    %v2263 = vpop.permute.xlu0 %2262
    %2264 = vset.pattern.permute.xlu0 0
    %2265 = vperm.xlu0 %2264, %v2096
    %v2266 = vpop.permute.xlu0 %2265
    %2267 = vset.pattern.permute.xlu0 0
    %2268 = vperm.xlu0 %2267, %v2097
    %v2269 = vpop.permute.xlu0 %2268
    %2270 = vset.pattern.permute.xlu0 0
    %2271 = vperm.xlu0 %2270, %v2098
    %v2272 = vpop.permute.xlu0 %2271
    %2273 = vset.pattern.permute.xlu0 0
    %2274 = vperm.xlu0 %2273, %v2099
    %v2275 = vpop.permute.xlu0 %2274
    %2276 = vset.pattern.permute.xlu0 0
    %2277 = vperm.xlu0 %2276, %v2100
    %v2278 = vpop.permute.xlu0 %2277
    %2279 = vset.pattern.permute.xlu0 0
    %2280 = vperm.xlu0 %2279, %v2101
    %v2281 = vpop.permute.xlu0 %2280
    %2282 = vset.pattern.permute.xlu0 0
    %2283 = vperm.xlu0 %2282, %v2102
    %v2284 = vpop.permute.xlu0 %2283
    %2285 = vset.pattern.permute.xlu0 0
    %2286 = vperm.xlu0 %2285, %v2103
    %v2287 = vpop.permute.xlu0 %2286
    %2288 = vset.pattern.permute.xlu0 0
    %2289 = vperm.xlu0 %2288, %v2104
    %v2290 = vpop.permute.xlu0 %2289
    %2291 = vset.pattern.permute.xlu0 0
    %2292 = vperm.xlu0 %2291, %v2105
    %v2293 = vpop.permute.xlu0 %2292
    %2294 = vset.pattern.permute.xlu0 0
    %2295 = vperm.xlu0 %2294, %v2106
    %v2296 = vpop.permute.xlu0 %2295
    %2297 = vset.pattern.permute.xlu0 0
    %2298 = vperm.xlu0 %2297, %v2107
    %v2299 = vpop.permute.xlu0 %2298
    %2300 = vset.pattern.permute.xlu0 0
    %2301 = vperm.xlu0 %2300, %v2108
    %v2302 = vpop.permute.xlu0 %2301
    %2303 = vset.pattern.permute.xlu0 0
    %2304 = vperm.xlu0 %2303, %v2109
    %v2305 = vpop.permute.xlu0 %2304
    %2306 = vset.pattern.permute.xlu0 0
    %2307 = vperm.xlu0 %2306, %v2110
    %v2308 = vpop.permute.xlu0 %2307
    %2309 = vset.pattern.permute.xlu0 0
    %2310 = vperm.xlu0 %2309, %v2111
    %v2311 = vpop.permute.xlu0 %2310
    %2312 = vset.pattern.permute.xlu0 0
    %2313 = vperm.xlu0 %2312, %v2112
    %v2314 = vpop.permute.xlu0 %2313
    %2315 = vset.pattern.permute.xlu0 0
    %2316 = vperm.xlu0 %2315, %v2113
    %v2317 = vpop.permute.xlu0 %2316
    %2318 = vset.pattern.permute.xlu0 0
    %2319 = vperm.xlu0 %2318, %v2114
    %v2320 = vpop.permute.xlu0 %2319
    %2321 = vset.pattern.permute.xlu0 0
    %2322 = vperm.xlu0 %2321, %v2115
    %v2323 = vpop.permute.xlu0 %2322
    %2324 = vset.pattern.permute.xlu0 0
    %2325 = vperm.xlu0 %2324, %v2116
    %v2326 = vpop.permute.xlu0 %2325
    %2327 = vset.pattern.permute.xlu0 0
    %2328 = vperm.xlu0 %2327, %v2117
    %v2329 = vpop.permute.xlu0 %2328
    %2330 = vset.pattern.permute.xlu0 0
    %2331 = vperm.xlu0 %2330, %v2118
    %v2332 = vpop.permute.xlu0 %2331
    %2333 = vset.pattern.permute.xlu0 0
    %2334 = vperm.xlu0 %2333, %v2119
    %v2335 = vpop.permute.xlu0 %2334
    %2336 = vset.pattern.permute.xlu0 0
    %2337 = vperm.xlu0 %2336, %v2120
    %v2338 = vpop.permute.xlu0 %2337
    %2339 = vset.pattern.permute.xlu0 0
    %2340 = vperm.xlu0 %2339, %v2121
    %v2341 = vpop.permute.xlu0 %2340
    %2342 = vset.pattern.permute.xlu0 0
    %2343 = vperm.xlu0 %2342, %v2122
    %v2344 = vpop.permute.xlu0 %2343
    %2345 = vset.pattern.permute.xlu0 0
    %2346 = vperm.xlu0 %2345, %v2123
    %v2347 = vpop.permute.xlu0 %2346
    %2348 = vset.pattern.permute.xlu0 0
    %2349 = vperm.xlu0 %2348, %v2124
    %v2350 = vpop.permute.xlu0 %2349
    %2351 = vset.pattern.permute.xlu0 0
    %2352 = vperm.xlu0 %2351, %v2125
    %v2353 = vpop.permute.xlu0 %2352
    %2354 = vset.pattern.permute.xlu0 0
    %2355 = vperm.xlu0 %2354, %v2126
    %v2356 = vpop.permute.xlu0 %2355
    %2357 = vset.pattern.permute.xlu0 0
    %2358 = vperm.xlu0 %2357, %v2127
    %v2359 = vpop.permute.xlu0 %2358
    %2360 = vset.pattern.permute.xlu0 0
    %2361 = vperm.xlu0 %2360, %v2128
    %v2362 = vpop.permute.xlu0 %2361
    %2363 = vset.pattern.permute.xlu0 0
    %2364 = vperm.xlu0 %2363, %v2129
    %v2365 = vpop.permute.xlu0 %2364
    %2366 = vset.pattern.permute.xlu0 0
    %2367 = vperm.xlu0 %2366, %v2130
    %v2368 = vpop.permute.xlu0 %2367
    %2369 = vset.pattern.permute.xlu0 0
    %2370 = vperm.xlu0 %2369, %v2131
    %v2371 = vpop.permute.xlu0 %2370
    %2372 = vset.pattern.permute.xlu0 0
    %2373 = vperm.xlu0 %2372, %v2132
    %v2374 = vpop.permute.xlu0 %2373
    %2375 = vset.pattern.permute.xlu0 0
    %2376 = vperm.xlu0 %2375, %v2133
    %v2377 = vpop.permute.xlu0 %2376
    %2378 = vset.pattern.permute.xlu0 0
    %2379 = vperm.xlu0 %2378, %v2134
    %v2380 = vpop.permute.xlu0 %2379
    %2381 = vset.pattern.permute.xlu0 0
    %2382 = vperm.xlu0 %2381, %v2135
    %v2383 = vpop.permute.xlu0 %2382
    %2384 = vset.pattern.permute.xlu0 0
    %2385 = vperm.xlu0 %2384, %v2136
    %v2386 = vpop.permute.xlu0 %2385
    %2387 = vset.pattern.permute.xlu0 0
    %2388 = vperm.xlu0 %2387, %v2137
    %v2389 = vpop.permute.xlu0 %2388
    %2390 = vset.pattern.permute.xlu0 0
    %2391 = vperm.xlu0 %2390, %v2138
    %v2392 = vpop.permute.xlu0 %2391
    %2393 = vset.pattern.permute.xlu0 0
    %2394 = vperm.xlu0 %2393, %v2139
    %v2395 = vpop.permute.xlu0 %2394
    %v2396 = vlaneseq
    %v2397 = vshrl.u32 %v2396, 7
    %v2398 = vsub.s32 %v89, %v2397
    %v2399 = vrot.slane %v2206, %v2398
    %v2400 = vlaneseq
    %v2401 = vshrl.u32 %v2400, 7
    %v2402 = vsub.s32 %v89, %v2401
    %v2403 = vrot.slane %v2209, %v2402
    %v2404 = vlaneseq
    %v2405 = vshrl.u32 %v2404, 7
    %v2406 = vsub.s32 %v89, %v2405
    %v2407 = vrot.slane %v2212, %v2406
    %v2408 = vlaneseq
    %v2409 = vshrl.u32 %v2408, 7
    %v2410 = vsub.s32 %v89, %v2409
    %v2411 = vrot.slane %v2215, %v2410
    %v2412 = vlaneseq
    %v2413 = vshrl.u32 %v2412, 7
    %v2414 = vsub.s32 %v89, %v2413
    %v2415 = vrot.slane %v2218, %v2414
    %v2416 = vlaneseq
    %v2417 = vshrl.u32 %v2416, 7
    %v2418 = vsub.s32 %v89, %v2417
    %v2419 = vrot.slane %v2221, %v2418
    %v2420 = vlaneseq
    %v2421 = vshrl.u32 %v2420, 7
    %v2422 = vsub.s32 %v89, %v2421
    %v2423 = vrot.slane %v2224, %v2422
    %v2424 = vlaneseq
    %v2425 = vshrl.u32 %v2424, 7
    %v2426 = vsub.s32 %v89, %v2425
    %v2427 = vrot.slane %v2227, %v2426
    %v2428 = vlaneseq
    %v2429 = vshrl.u32 %v2428, 7
    %v2430 = vsub.s32 %v89, %v2429
    %v2431 = vrot.slane %v2230, %v2430
    %v2432 = vlaneseq
    %v2433 = vshrl.u32 %v2432, 7
    %v2434 = vsub.s32 %v89, %v2433
    %v2435 = vrot.slane %v2233, %v2434
    %v2436 = vlaneseq
    %v2437 = vshrl.u32 %v2436, 7
    %v2438 = vsub.s32 %v89, %v2437
    %v2439 = vrot.slane %v2236, %v2438
    %v2440 = vlaneseq
    %v2441 = vshrl.u32 %v2440, 7
    %v2442 = vsub.s32 %v89, %v2441
    %v2443 = vrot.slane %v2239, %v2442
    %v2444 = vlaneseq
    %v2445 = vshrl.u32 %v2444, 7
    %v2446 = vsub.s32 %v89, %v2445
    %v2447 = vrot.slane %v2242, %v2446
    %v2448 = vlaneseq
    %v2449 = vshrl.u32 %v2448, 7
    %v2450 = vsub.s32 %v89, %v2449
    %v2451 = vrot.slane %v2245, %v2450
    %v2452 = vlaneseq
    %v2453 = vshrl.u32 %v2452, 7
    %v2454 = vsub.s32 %v89, %v2453
    %v2455 = vrot.slane %v2248, %v2454
    %v2456 = vlaneseq
    %v2457 = vshrl.u32 %v2456, 7
    %v2458 = vsub.s32 %v89, %v2457
    %v2459 = vrot.slane %v2251, %v2458
    %v2460 = vlaneseq
    %v2461 = vshrl.u32 %v2460, 7
    %v2462 = vsub.s32 %v89, %v2461
    %v2463 = vrot.slane %v2254, %v2462
    %v2464 = vlaneseq
    %v2465 = vshrl.u32 %v2464, 7
    %v2466 = vsub.s32 %v89, %v2465
    %v2467 = vrot.slane %v2257, %v2466
    %v2468 = vlaneseq
    %v2469 = vshrl.u32 %v2468, 7
    %v2470 = vsub.s32 %v89, %v2469
    %v2471 = vrot.slane %v2260, %v2470
    %v2472 = vlaneseq
    %v2473 = vshrl.u32 %v2472, 7
    %v2474 = vsub.s32 %v89, %v2473
    %v2475 = vrot.slane %v2263, %v2474
    %v2476 = vlaneseq
    %v2477 = vshrl.u32 %v2476, 7
    %v2478 = vsub.s32 %v89, %v2477
    %v2479 = vrot.slane %v2266, %v2478
    %v2480 = vlaneseq
    %v2481 = vshrl.u32 %v2480, 7
    %v2482 = vsub.s32 %v89, %v2481
    %v2483 = vrot.slane %v2269, %v2482
    %v2484 = vlaneseq
    %v2485 = vshrl.u32 %v2484, 7
    %v2486 = vsub.s32 %v89, %v2485
    %v2487 = vrot.slane %v2272, %v2486
    %v2488 = vlaneseq
    %v2489 = vshrl.u32 %v2488, 7
    %v2490 = vsub.s32 %v89, %v2489
    %v2491 = vrot.slane %v2275, %v2490
    %v2492 = vlaneseq
    %v2493 = vshrl.u32 %v2492, 7
    %v2494 = vsub.s32 %v89, %v2493
    %v2495 = vrot.slane %v2278, %v2494
    %v2496 = vlaneseq
    %v2497 = vshrl.u32 %v2496, 7
    %v2498 = vsub.s32 %v89, %v2497
    %v2499 = vrot.slane %v2281, %v2498
    %v2500 = vlaneseq
    %v2501 = vshrl.u32 %v2500, 7
    %v2502 = vsub.s32 %v89, %v2501
    %v2503 = vrot.slane %v2284, %v2502
    %v2504 = vlaneseq
    %v2505 = vshrl.u32 %v2504, 7
    %v2506 = vsub.s32 %v89, %v2505
    %v2507 = vrot.slane %v2287, %v2506
    %v2508 = vlaneseq
    %v2509 = vshrl.u32 %v2508, 7
    %v2510 = vsub.s32 %v89, %v2509
    %v2511 = vrot.slane %v2290, %v2510
    %v2512 = vlaneseq
    %v2513 = vshrl.u32 %v2512, 7
    %v2514 = vsub.s32 %v89, %v2513
    %v2515 = vrot.slane %v2293, %v2514
    %v2516 = vlaneseq
    %v2517 = vshrl.u32 %v2516, 7
    %v2518 = vsub.s32 %v89, %v2517
    %v2519 = vrot.slane %v2296, %v2518
    %v2520 = vlaneseq
    %v2521 = vshrl.u32 %v2520, 7
    %v2522 = vsub.s32 %v89, %v2521
    %v2523 = vrot.slane %v2299, %v2522
    %v2524 = vlaneseq
    %v2525 = vshrl.u32 %v2524, 7
    %v2526 = vsub.s32 %v89, %v2525
    %v2527 = vrot.slane %v2302, %v2526
    %v2528 = vlaneseq
    %v2529 = vshrl.u32 %v2528, 7
    %v2530 = vsub.s32 %v89, %v2529
    %v2531 = vrot.slane %v2305, %v2530
    %v2532 = vlaneseq
    %v2533 = vshrl.u32 %v2532, 7
    %v2534 = vsub.s32 %v89, %v2533
    %v2535 = vrot.slane %v2308, %v2534
    %v2536 = vlaneseq
    %v2537 = vshrl.u32 %v2536, 7
    %v2538 = vsub.s32 %v89, %v2537
    %v2539 = vrot.slane %v2311, %v2538
    %v2540 = vlaneseq
    %v2541 = vshrl.u32 %v2540, 7
    %v2542 = vsub.s32 %v89, %v2541
    %v2543 = vrot.slane %v2314, %v2542
    %v2544 = vlaneseq
    %v2545 = vshrl.u32 %v2544, 7
    %v2546 = vsub.s32 %v89, %v2545
    %v2547 = vrot.slane %v2317, %v2546
    %v2548 = vlaneseq
    %v2549 = vshrl.u32 %v2548, 7
    %v2550 = vsub.s32 %v89, %v2549
    %v2551 = vrot.slane %v2320, %v2550
    %v2552 = vlaneseq
    %v2553 = vshrl.u32 %v2552, 7
    %v2554 = vsub.s32 %v89, %v2553
    %v2555 = vrot.slane %v2323, %v2554
    %v2556 = vlaneseq
    %v2557 = vshrl.u32 %v2556, 7
    %v2558 = vsub.s32 %v89, %v2557
    %v2559 = vrot.slane %v2326, %v2558
    %v2560 = vlaneseq
    %v2561 = vshrl.u32 %v2560, 7
    %v2562 = vsub.s32 %v89, %v2561
    %v2563 = vrot.slane %v2329, %v2562
    %v2564 = vlaneseq
    %v2565 = vshrl.u32 %v2564, 7
    %v2566 = vsub.s32 %v89, %v2565
    %v2567 = vrot.slane %v2332, %v2566
    %v2568 = vlaneseq
    %v2569 = vshrl.u32 %v2568, 7
    %v2570 = vsub.s32 %v89, %v2569
    %v2571 = vrot.slane %v2335, %v2570
    %v2572 = vlaneseq
    %v2573 = vshrl.u32 %v2572, 7
    %v2574 = vsub.s32 %v89, %v2573
    %v2575 = vrot.slane %v2338, %v2574
    %v2576 = vlaneseq
    %v2577 = vshrl.u32 %v2576, 7
    %v2578 = vsub.s32 %v89, %v2577
    %v2579 = vrot.slane %v2341, %v2578
    %v2580 = vlaneseq
    %v2581 = vshrl.u32 %v2580, 7
    %v2582 = vsub.s32 %v89, %v2581
    %v2583 = vrot.slane %v2344, %v2582
    %v2584 = vlaneseq
    %v2585 = vshrl.u32 %v2584, 7
    %v2586 = vsub.s32 %v89, %v2585
    %v2587 = vrot.slane %v2347, %v2586
    %v2588 = vlaneseq
    %v2589 = vshrl.u32 %v2588, 7
    %v2590 = vsub.s32 %v89, %v2589
    %v2591 = vrot.slane %v2350, %v2590
    %v2592 = vlaneseq
    %v2593 = vshrl.u32 %v2592, 7
    %v2594 = vsub.s32 %v89, %v2593
    %v2595 = vrot.slane %v2353, %v2594
    %v2596 = vlaneseq
    %v2597 = vshrl.u32 %v2596, 7
    %v2598 = vsub.s32 %v89, %v2597
    %v2599 = vrot.slane %v2356, %v2598
    %v2600 = vlaneseq
    %v2601 = vshrl.u32 %v2600, 7
    %v2602 = vsub.s32 %v89, %v2601
    %v2603 = vrot.slane %v2359, %v2602
    %v2604 = vlaneseq
    %v2605 = vshrl.u32 %v2604, 7
    %v2606 = vsub.s32 %v89, %v2605
    %v2607 = vrot.slane %v2362, %v2606
    %v2608 = vlaneseq
    %v2609 = vshrl.u32 %v2608, 7
    %v2610 = vsub.s32 %v89, %v2609
    %v2611 = vrot.slane %v2365, %v2610
    %v2612 = vlaneseq
    %v2613 = vshrl.u32 %v2612, 7
    %v2614 = vsub.s32 %v89, %v2613
    %v2615 = vrot.slane %v2368, %v2614
    %v2616 = vlaneseq
    %v2617 = vshrl.u32 %v2616, 7
    %v2618 = vsub.s32 %v89, %v2617
    %v2619 = vrot.slane %v2371, %v2618
    %v2620 = vlaneseq
    %v2621 = vshrl.u32 %v2620, 7
    %v2622 = vsub.s32 %v89, %v2621
    %v2623 = vrot.slane %v2374, %v2622
    %v2624 = vlaneseq
    %v2625 = vshrl.u32 %v2624, 7
    %v2626 = vsub.s32 %v89, %v2625
    %v2627 = vrot.slane %v2377, %v2626
    %v2628 = vlaneseq
    %v2629 = vshrl.u32 %v2628, 7
    %v2630 = vsub.s32 %v89, %v2629
    %v2631 = vrot.slane %v2380, %v2630
    %v2632 = vlaneseq
    %v2633 = vshrl.u32 %v2632, 7
    %v2634 = vsub.s32 %v89, %v2633
    %v2635 = vrot.slane %v2383, %v2634
    %v2636 = vlaneseq
    %v2637 = vshrl.u32 %v2636, 7
    %v2638 = vsub.s32 %v89, %v2637
    %v2639 = vrot.slane %v2386, %v2638
    %v2640 = vlaneseq
    %v2641 = vshrl.u32 %v2640, 7
    %v2642 = vsub.s32 %v89, %v2641
    %v2643 = vrot.slane %v2389, %v2642
    %v2644 = vlaneseq
    %v2645 = vshrl.u32 %v2644, 7
    %v2646 = vsub.s32 %v89, %v2645
    %v2647 = vrot.slane %v2392, %v2646
    %v2648 = vlaneseq
    %v2649 = vshrl.u32 %v2648, 7
    %v2650 = vsub.s32 %v89, %v2649
    %v2651 = vrot.slane %v2395, %v2650
    %v2652 = vsel %vm1380, %v2403, %v2399
    %v2653 = vsel %vm1382, %v2407, %v2652
    %v2654 = vsel %vm1384, %v2411, %v2653
    %v2655 = vsel %vm1386, %v2415, %v2654
    %v2656 = vsel %vm1388, %v2419, %v2655
    %v2657 = vsel %vm1390, %v2423, %v2656
    %v2658 = vsel %vm1392, %v2427, %v2657
    %v2659 = vsel %vm1380, %v2435, %v2431
    %v2660 = vsel %vm1382, %v2439, %v2659
    %v2661 = vsel %vm1384, %v2443, %v2660
    %v2662 = vsel %vm1386, %v2447, %v2661
    %v2663 = vsel %vm1388, %v2451, %v2662
    %v2664 = vsel %vm1390, %v2455, %v2663
    %v2665 = vsel %vm1392, %v2459, %v2664
    %v2666 = vsel %vm1380, %v2467, %v2463
    %v2667 = vsel %vm1382, %v2471, %v2666
    %v2668 = vsel %vm1384, %v2475, %v2667
    %v2669 = vsel %vm1386, %v2479, %v2668
    %v2670 = vsel %vm1388, %v2483, %v2669
    %v2671 = vsel %vm1390, %v2487, %v2670
    %v2672 = vsel %vm1392, %v2491, %v2671
    %v2673 = vsel %vm1380, %v2499, %v2495
    %v2674 = vsel %vm1382, %v2503, %v2673
    %v2675 = vsel %vm1384, %v2507, %v2674
    %v2676 = vsel %vm1386, %v2511, %v2675
    %v2677 = vsel %vm1388, %v2515, %v2676
    %v2678 = vsel %vm1390, %v2519, %v2677
    %v2679 = vsel %vm1392, %v2523, %v2678
    %v2680 = vsel %vm1380, %v2531, %v2527
    %v2681 = vsel %vm1382, %v2535, %v2680
    %v2682 = vsel %vm1384, %v2539, %v2681
    %v2683 = vsel %vm1386, %v2543, %v2682
    %v2684 = vsel %vm1388, %v2547, %v2683
    %v2685 = vsel %vm1390, %v2551, %v2684
    %v2686 = vsel %vm1392, %v2555, %v2685
    %v2687 = vsel %vm1380, %v2563, %v2559
    %v2688 = vsel %vm1382, %v2567, %v2687
    %v2689 = vsel %vm1384, %v2571, %v2688
    %v2690 = vsel %vm1386, %v2575, %v2689
    %v2691 = vsel %vm1388, %v2579, %v2690
    %v2692 = vsel %vm1390, %v2583, %v2691
    %v2693 = vsel %vm1392, %v2587, %v2692
    %v2694 = vsel %vm1380, %v2595, %v2591
    %v2695 = vsel %vm1382, %v2599, %v2694
    %v2696 = vsel %vm1384, %v2603, %v2695
    %v2697 = vsel %vm1386, %v2607, %v2696
    %v2698 = vsel %vm1388, %v2611, %v2697
    %v2699 = vsel %vm1390, %v2615, %v2698
    %v2700 = vsel %vm1392, %v2619, %v2699
    %v2701 = vsel %vm1380, %v2627, %v2623
    %v2702 = vsel %vm1382, %v2631, %v2701
    %v2703 = vsel %vm1384, %v2635, %v2702
    %v2704 = vsel %vm1386, %v2639, %v2703
    %v2705 = vsel %vm1388, %v2643, %v2704
    %v2706 = vsel %vm1390, %v2647, %v2705
    %v2707 = vsel %vm1392, %v2651, %v2706
    %v2716 = vsel %vm101, %v2658, 0.0
    %2717 = vadd.xlane.f32.xlu0 %v2716
    %v2718 = vpop.xlane.xlu0 %2717
    %v2719 = vsel %vm101, %v2665, 0.0
    %2720 = vadd.xlane.f32.xlu0 %v2719
    %v2721 = vpop.xlane.xlu0 %2720
    %v2722 = vsel %vm101, %v2672, 0.0
    %2723 = vadd.xlane.f32.xlu0 %v2722
    %v2724 = vpop.xlane.xlu0 %2723
    %v2725 = vsel %vm101, %v2679, 0.0
    %2726 = vadd.xlane.f32.xlu0 %v2725
    %v2727 = vpop.xlane.xlu0 %2726
    %v2728 = vsel %vm101, %v2686, 0.0
    %2729 = vadd.xlane.f32.xlu0 %v2728
    %v2730 = vpop.xlane.xlu0 %2729
    %v2731 = vsel %vm101, %v2693, 0.0
    %2732 = vadd.xlane.f32.xlu0 %v2731
    %v2733 = vpop.xlane.xlu0 %2732
    %v2734 = vsel %vm101, %v2700, 0.0
    %2735 = vadd.xlane.f32.xlu0 %v2734
    %v2736 = vpop.xlane.xlu0 %2735
    %v2737 = vsel %vm101, %v2707, 0.0
    %2738 = vadd.xlane.f32.xlu0 %v2737
    %v2739 = vpop.xlane.xlu0 %2738
    %v2741 = vlaneseq
    %v2742 = vshrl.u32 %v2741, 7
    %v2743 = vsub.s32 0, %v2742
    %v2744 = vrot.slane %v161, %v2743
    %2746 = vbcast.lane.b32.xlu0 %v2744, 256
    %v2747 = vpop.permute.xlu0 %2746
    %v2748 = vlaneseq
    %v2749 = vshrl.u32 %v2748, 7
    %v2750 = vsub.s32 1, %v2749
    %v2751 = vrot.slane %v161, %v2750
    %2753 = vbcast.lane.b32.xlu0 %v2751, 256
    %v2754 = vpop.permute.xlu0 %2753
    %v2755 = vlaneseq
    %v2756 = vshrl.u32 %v2755, 7
    %v2757 = vsub.s32 2, %v2756
    %v2758 = vrot.slane %v161, %v2757
    %2760 = vbcast.lane.b32.xlu0 %v2758, 256
    %v2761 = vpop.permute.xlu0 %2760
    %v2762 = vlaneseq
    %v2763 = vshrl.u32 %v2762, 7
    %v2764 = vsub.s32 3, %v2763
    %v2765 = vrot.slane %v161, %v2764
    %2767 = vbcast.lane.b32.xlu0 %v2765, 256
    %v2768 = vpop.permute.xlu0 %2767
    %v2769 = vlaneseq
    %v2770 = vshrl.u32 %v2769, 7
    %v2771 = vsub.s32 4, %v2770
    %v2772 = vrot.slane %v161, %v2771
    %2774 = vbcast.lane.b32.xlu0 %v2772, 256
    %v2775 = vpop.permute.xlu0 %2774
    %v2776 = vlaneseq
    %v2777 = vshrl.u32 %v2776, 7
    %v2778 = vsub.s32 5, %v2777
    %v2779 = vrot.slane %v161, %v2778
    %2781 = vbcast.lane.b32.xlu0 %v2779, 256
    %v2782 = vpop.permute.xlu0 %2781
    %v2783 = vlaneseq
    %v2784 = vshrl.u32 %v2783, 7
    %v2785 = vsub.s32 6, %v2784
    %v2786 = vrot.slane %v161, %v2785
    %2788 = vbcast.lane.b32.xlu0 %v2786, 256
    %v2789 = vpop.permute.xlu0 %2788
    %v2790 = vlaneseq
    %v2791 = vshrl.u32 %v2790, 7
    %v2792 = vsub.s32 7, %v2791
    %v2793 = vrot.slane %v161, %v2792
    %2795 = vbcast.lane.b32.xlu0 %v2793, 256
    %v2796 = vpop.permute.xlu0 %2795
    %v2805 = vmul.f32 %v2718, %v2747
    %v2806 = vmul.f32 %v2718, %v2754
    %v2807 = vmul.f32 %v2718, %v2761
    %v2808 = vmul.f32 %v2718, %v2768
    %v2809 = vmul.f32 %v2718, %v2775
    %v2810 = vmul.f32 %v2718, %v2782
    %v2811 = vmul.f32 %v2718, %v2789
    %v2812 = vmul.f32 %v2718, %v2796
    %v2813 = vmul.f32 %v2721, %v2747
    %v2814 = vmul.f32 %v2721, %v2754
    %v2815 = vmul.f32 %v2721, %v2761
    %v2816 = vmul.f32 %v2721, %v2768
    %v2817 = vmul.f32 %v2721, %v2775
    %v2818 = vmul.f32 %v2721, %v2782
    %v2819 = vmul.f32 %v2721, %v2789
    %v2820 = vmul.f32 %v2721, %v2796
    %v2821 = vmul.f32 %v2724, %v2747
    %v2822 = vmul.f32 %v2724, %v2754
    %v2823 = vmul.f32 %v2724, %v2761
    %v2824 = vmul.f32 %v2724, %v2768
    %v2825 = vmul.f32 %v2724, %v2775
    %v2826 = vmul.f32 %v2724, %v2782
    %v2827 = vmul.f32 %v2724, %v2789
    %v2828 = vmul.f32 %v2724, %v2796
    %v2829 = vmul.f32 %v2727, %v2747
    %v2830 = vmul.f32 %v2727, %v2754
    %v2831 = vmul.f32 %v2727, %v2761
    %v2832 = vmul.f32 %v2727, %v2768
    %v2833 = vmul.f32 %v2727, %v2775
    %v2834 = vmul.f32 %v2727, %v2782
    %v2835 = vmul.f32 %v2727, %v2789
    %v2836 = vmul.f32 %v2727, %v2796
    %v2837 = vmul.f32 %v2730, %v2747
    %v2838 = vmul.f32 %v2730, %v2754
    %v2839 = vmul.f32 %v2730, %v2761
    %v2840 = vmul.f32 %v2730, %v2768
    %v2841 = vmul.f32 %v2730, %v2775
    %v2842 = vmul.f32 %v2730, %v2782
    %v2843 = vmul.f32 %v2730, %v2789
    %v2844 = vmul.f32 %v2730, %v2796
    %v2845 = vmul.f32 %v2733, %v2747
    %v2846 = vmul.f32 %v2733, %v2754
    %v2847 = vmul.f32 %v2733, %v2761
    %v2848 = vmul.f32 %v2733, %v2768
    %v2849 = vmul.f32 %v2733, %v2775
    %v2850 = vmul.f32 %v2733, %v2782
    %v2851 = vmul.f32 %v2733, %v2789
    %v2852 = vmul.f32 %v2733, %v2796
    %v2853 = vmul.f32 %v2736, %v2747
    %v2854 = vmul.f32 %v2736, %v2754
    %v2855 = vmul.f32 %v2736, %v2761
    %v2856 = vmul.f32 %v2736, %v2768
    %v2857 = vmul.f32 %v2736, %v2775
    %v2858 = vmul.f32 %v2736, %v2782
    %v2859 = vmul.f32 %v2736, %v2789
    %v2860 = vmul.f32 %v2736, %v2796
    %v2861 = vmul.f32 %v2739, %v2747
    %v2862 = vmul.f32 %v2739, %v2754
    %v2863 = vmul.f32 %v2739, %v2761
    %v2864 = vmul.f32 %v2739, %v2768
    %v2865 = vmul.f32 %v2739, %v2775
    %v2866 = vmul.f32 %v2739, %v2782
    %v2867 = vmul.f32 %v2739, %v2789
    %v2868 = vmul.f32 %v2739, %v2796
    %2933 = vset.pattern.permute.xlu0 0
    %2934 = vperm.xlu0 %2933, %v2805
    %v2935 = vpop.permute.xlu0 %2934
    %2936 = vset.pattern.permute.xlu0 0
    %2937 = vperm.xlu0 %2936, %v2806
    %v2938 = vpop.permute.xlu0 %2937
    %2939 = vset.pattern.permute.xlu0 0
    %2940 = vperm.xlu0 %2939, %v2807
    %v2941 = vpop.permute.xlu0 %2940
    %2942 = vset.pattern.permute.xlu0 0
    %2943 = vperm.xlu0 %2942, %v2808
    %v2944 = vpop.permute.xlu0 %2943
    %2945 = vset.pattern.permute.xlu0 0
    %2946 = vperm.xlu0 %2945, %v2809
    %v2947 = vpop.permute.xlu0 %2946
    %2948 = vset.pattern.permute.xlu0 0
    %2949 = vperm.xlu0 %2948, %v2810
    %v2950 = vpop.permute.xlu0 %2949
    %2951 = vset.pattern.permute.xlu0 0
    %2952 = vperm.xlu0 %2951, %v2811
    %v2953 = vpop.permute.xlu0 %2952
    %2954 = vset.pattern.permute.xlu0 0
    %2955 = vperm.xlu0 %2954, %v2812
    %v2956 = vpop.permute.xlu0 %2955
    %2957 = vset.pattern.permute.xlu0 0
    %2958 = vperm.xlu0 %2957, %v2813
    %v2959 = vpop.permute.xlu0 %2958
    %2960 = vset.pattern.permute.xlu0 0
    %2961 = vperm.xlu0 %2960, %v2814
    %v2962 = vpop.permute.xlu0 %2961
    %2963 = vset.pattern.permute.xlu0 0
    %2964 = vperm.xlu0 %2963, %v2815
    %v2965 = vpop.permute.xlu0 %2964
    %2966 = vset.pattern.permute.xlu0 0
    %2967 = vperm.xlu0 %2966, %v2816
    %v2968 = vpop.permute.xlu0 %2967
    %2969 = vset.pattern.permute.xlu0 0
    %2970 = vperm.xlu0 %2969, %v2817
    %v2971 = vpop.permute.xlu0 %2970
    %2972 = vset.pattern.permute.xlu0 0
    %2973 = vperm.xlu0 %2972, %v2818
    %v2974 = vpop.permute.xlu0 %2973
    %2975 = vset.pattern.permute.xlu0 0
    %2976 = vperm.xlu0 %2975, %v2819
    %v2977 = vpop.permute.xlu0 %2976
    %2978 = vset.pattern.permute.xlu0 0
    %2979 = vperm.xlu0 %2978, %v2820
    %v2980 = vpop.permute.xlu0 %2979
    %2981 = vset.pattern.permute.xlu0 0
    %2982 = vperm.xlu0 %2981, %v2821
    %v2983 = vpop.permute.xlu0 %2982
    %2984 = vset.pattern.permute.xlu0 0
    %2985 = vperm.xlu0 %2984, %v2822
    %v2986 = vpop.permute.xlu0 %2985
    %2987 = vset.pattern.permute.xlu0 0
    %2988 = vperm.xlu0 %2987, %v2823
    %v2989 = vpop.permute.xlu0 %2988
    %2990 = vset.pattern.permute.xlu0 0
    %2991 = vperm.xlu0 %2990, %v2824
    %v2992 = vpop.permute.xlu0 %2991
    %2993 = vset.pattern.permute.xlu0 0
    %2994 = vperm.xlu0 %2993, %v2825
    %v2995 = vpop.permute.xlu0 %2994
    %2996 = vset.pattern.permute.xlu0 0
    %2997 = vperm.xlu0 %2996, %v2826
    %v2998 = vpop.permute.xlu0 %2997
    %2999 = vset.pattern.permute.xlu0 0
    %3000 = vperm.xlu0 %2999, %v2827
    %v3001 = vpop.permute.xlu0 %3000
    %3002 = vset.pattern.permute.xlu0 0
    %3003 = vperm.xlu0 %3002, %v2828
    %v3004 = vpop.permute.xlu0 %3003
    %3005 = vset.pattern.permute.xlu0 0
    %3006 = vperm.xlu0 %3005, %v2829
    %v3007 = vpop.permute.xlu0 %3006
    %3008 = vset.pattern.permute.xlu0 0
    %3009 = vperm.xlu0 %3008, %v2830
    %v3010 = vpop.permute.xlu0 %3009
    %3011 = vset.pattern.permute.xlu0 0
    %3012 = vperm.xlu0 %3011, %v2831
    %v3013 = vpop.permute.xlu0 %3012
    %3014 = vset.pattern.permute.xlu0 0
    %3015 = vperm.xlu0 %3014, %v2832
    %v3016 = vpop.permute.xlu0 %3015
    %3017 = vset.pattern.permute.xlu0 0
    %3018 = vperm.xlu0 %3017, %v2833
    %v3019 = vpop.permute.xlu0 %3018
    %3020 = vset.pattern.permute.xlu0 0
    %3021 = vperm.xlu0 %3020, %v2834
    %v3022 = vpop.permute.xlu0 %3021
    %3023 = vset.pattern.permute.xlu0 0
    %3024 = vperm.xlu0 %3023, %v2835
    %v3025 = vpop.permute.xlu0 %3024
    %3026 = vset.pattern.permute.xlu0 0
    %3027 = vperm.xlu0 %3026, %v2836
    %v3028 = vpop.permute.xlu0 %3027
    %3029 = vset.pattern.permute.xlu0 0
    %3030 = vperm.xlu0 %3029, %v2837
    %v3031 = vpop.permute.xlu0 %3030
    %3032 = vset.pattern.permute.xlu0 0
    %3033 = vperm.xlu0 %3032, %v2838
    %v3034 = vpop.permute.xlu0 %3033
    %3035 = vset.pattern.permute.xlu0 0
    %3036 = vperm.xlu0 %3035, %v2839
    %v3037 = vpop.permute.xlu0 %3036
    %3038 = vset.pattern.permute.xlu0 0
    %3039 = vperm.xlu0 %3038, %v2840
    %v3040 = vpop.permute.xlu0 %3039
    %3041 = vset.pattern.permute.xlu0 0
    %3042 = vperm.xlu0 %3041, %v2841
    %v3043 = vpop.permute.xlu0 %3042
    %3044 = vset.pattern.permute.xlu0 0
    %3045 = vperm.xlu0 %3044, %v2842
    %v3046 = vpop.permute.xlu0 %3045
    %3047 = vset.pattern.permute.xlu0 0
    %3048 = vperm.xlu0 %3047, %v2843
    %v3049 = vpop.permute.xlu0 %3048
    %3050 = vset.pattern.permute.xlu0 0
    %3051 = vperm.xlu0 %3050, %v2844
    %v3052 = vpop.permute.xlu0 %3051
    %3053 = vset.pattern.permute.xlu0 0
    %3054 = vperm.xlu0 %3053, %v2845
    %v3055 = vpop.permute.xlu0 %3054
    %3056 = vset.pattern.permute.xlu0 0
    %3057 = vperm.xlu0 %3056, %v2846
    %v3058 = vpop.permute.xlu0 %3057
    %3059 = vset.pattern.permute.xlu0 0
    %3060 = vperm.xlu0 %3059, %v2847
    %v3061 = vpop.permute.xlu0 %3060
    %3062 = vset.pattern.permute.xlu0 0
    %3063 = vperm.xlu0 %3062, %v2848
    %v3064 = vpop.permute.xlu0 %3063
    %3065 = vset.pattern.permute.xlu0 0
    %3066 = vperm.xlu0 %3065, %v2849
    %v3067 = vpop.permute.xlu0 %3066
    %3068 = vset.pattern.permute.xlu0 0
    %3069 = vperm.xlu0 %3068, %v2850
    %v3070 = vpop.permute.xlu0 %3069
    %3071 = vset.pattern.permute.xlu0 0
    %3072 = vperm.xlu0 %3071, %v2851
    %v3073 = vpop.permute.xlu0 %3072
    %3074 = vset.pattern.permute.xlu0 0
    %3075 = vperm.xlu0 %3074, %v2852
    %v3076 = vpop.permute.xlu0 %3075
    %3077 = vset.pattern.permute.xlu0 0
    %3078 = vperm.xlu0 %3077, %v2853
    %v3079 = vpop.permute.xlu0 %3078
    %3080 = vset.pattern.permute.xlu0 0
    %3081 = vperm.xlu0 %3080, %v2854
    %v3082 = vpop.permute.xlu0 %3081
    %3083 = vset.pattern.permute.xlu0 0
    %3084 = vperm.xlu0 %3083, %v2855
    %v3085 = vpop.permute.xlu0 %3084
    %3086 = vset.pattern.permute.xlu0 0
    %3087 = vperm.xlu0 %3086, %v2856
    %v3088 = vpop.permute.xlu0 %3087
    %3089 = vset.pattern.permute.xlu0 0
    %3090 = vperm.xlu0 %3089, %v2857
    %v3091 = vpop.permute.xlu0 %3090
    %3092 = vset.pattern.permute.xlu0 0
    %3093 = vperm.xlu0 %3092, %v2858
    %v3094 = vpop.permute.xlu0 %3093
    %3095 = vset.pattern.permute.xlu0 0
    %3096 = vperm.xlu0 %3095, %v2859
    %v3097 = vpop.permute.xlu0 %3096
    %3098 = vset.pattern.permute.xlu0 0
    %3099 = vperm.xlu0 %3098, %v2860
    %v3100 = vpop.permute.xlu0 %3099
    %3101 = vset.pattern.permute.xlu0 0
    %3102 = vperm.xlu0 %3101, %v2861
    %v3103 = vpop.permute.xlu0 %3102
    %3104 = vset.pattern.permute.xlu0 0
    %3105 = vperm.xlu0 %3104, %v2862
    %v3106 = vpop.permute.xlu0 %3105
    %3107 = vset.pattern.permute.xlu0 0
    %3108 = vperm.xlu0 %3107, %v2863
    %v3109 = vpop.permute.xlu0 %3108
    %3110 = vset.pattern.permute.xlu0 0
    %3111 = vperm.xlu0 %3110, %v2864
    %v3112 = vpop.permute.xlu0 %3111
    %3113 = vset.pattern.permute.xlu0 0
    %3114 = vperm.xlu0 %3113, %v2865
    %v3115 = vpop.permute.xlu0 %3114
    %3116 = vset.pattern.permute.xlu0 0
    %3117 = vperm.xlu0 %3116, %v2866
    %v3118 = vpop.permute.xlu0 %3117
    %3119 = vset.pattern.permute.xlu0 0
    %3120 = vperm.xlu0 %3119, %v2867
    %v3121 = vpop.permute.xlu0 %3120
    %3122 = vset.pattern.permute.xlu0 0
    %3123 = vperm.xlu0 %3122, %v2868
    %v3124 = vpop.permute.xlu0 %3123
    %v3125 = vlaneseq
    %v3126 = vshrl.u32 %v3125, 7
    %v3127 = vsub.s32 %v89, %v3126
    %v3128 = vrot.slane %v2935, %v3127
    %v3129 = vlaneseq
    %v3130 = vshrl.u32 %v3129, 7
    %v3131 = vsub.s32 %v89, %v3130
    %v3132 = vrot.slane %v2938, %v3131
    %v3133 = vlaneseq
    %v3134 = vshrl.u32 %v3133, 7
    %v3135 = vsub.s32 %v89, %v3134
    %v3136 = vrot.slane %v2941, %v3135
    %v3137 = vlaneseq
    %v3138 = vshrl.u32 %v3137, 7
    %v3139 = vsub.s32 %v89, %v3138
    %v3140 = vrot.slane %v2944, %v3139
    %v3141 = vlaneseq
    %v3142 = vshrl.u32 %v3141, 7
    %v3143 = vsub.s32 %v89, %v3142
    %v3144 = vrot.slane %v2947, %v3143
    %v3145 = vlaneseq
    %v3146 = vshrl.u32 %v3145, 7
    %v3147 = vsub.s32 %v89, %v3146
    %v3148 = vrot.slane %v2950, %v3147
    %v3149 = vlaneseq
    %v3150 = vshrl.u32 %v3149, 7
    %v3151 = vsub.s32 %v89, %v3150
    %v3152 = vrot.slane %v2953, %v3151
    %v3153 = vlaneseq
    %v3154 = vshrl.u32 %v3153, 7
    %v3155 = vsub.s32 %v89, %v3154
    %v3156 = vrot.slane %v2956, %v3155
    %v3157 = vlaneseq
    %v3158 = vshrl.u32 %v3157, 7
    %v3159 = vsub.s32 %v89, %v3158
    %v3160 = vrot.slane %v2959, %v3159
    %v3161 = vlaneseq
    %v3162 = vshrl.u32 %v3161, 7
    %v3163 = vsub.s32 %v89, %v3162
    %v3164 = vrot.slane %v2962, %v3163
    %v3165 = vlaneseq
    %v3166 = vshrl.u32 %v3165, 7
    %v3167 = vsub.s32 %v89, %v3166
    %v3168 = vrot.slane %v2965, %v3167
    %v3169 = vlaneseq
    %v3170 = vshrl.u32 %v3169, 7
    %v3171 = vsub.s32 %v89, %v3170
    %v3172 = vrot.slane %v2968, %v3171
    %v3173 = vlaneseq
    %v3174 = vshrl.u32 %v3173, 7
    %v3175 = vsub.s32 %v89, %v3174
    %v3176 = vrot.slane %v2971, %v3175
    %v3177 = vlaneseq
    %v3178 = vshrl.u32 %v3177, 7
    %v3179 = vsub.s32 %v89, %v3178
    %v3180 = vrot.slane %v2974, %v3179
    %v3181 = vlaneseq
    %v3182 = vshrl.u32 %v3181, 7
    %v3183 = vsub.s32 %v89, %v3182
    %v3184 = vrot.slane %v2977, %v3183
    %v3185 = vlaneseq
    %v3186 = vshrl.u32 %v3185, 7
    %v3187 = vsub.s32 %v89, %v3186
    %v3188 = vrot.slane %v2980, %v3187
    %v3189 = vlaneseq
    %v3190 = vshrl.u32 %v3189, 7
    %v3191 = vsub.s32 %v89, %v3190
    %v3192 = vrot.slane %v2983, %v3191
    %v3193 = vlaneseq
    %v3194 = vshrl.u32 %v3193, 7
    %v3195 = vsub.s32 %v89, %v3194
    %v3196 = vrot.slane %v2986, %v3195
    %v3197 = vlaneseq
    %v3198 = vshrl.u32 %v3197, 7
    %v3199 = vsub.s32 %v89, %v3198
    %v3200 = vrot.slane %v2989, %v3199
    %v3201 = vlaneseq
    %v3202 = vshrl.u32 %v3201, 7
    %v3203 = vsub.s32 %v89, %v3202
    %v3204 = vrot.slane %v2992, %v3203
    %v3205 = vlaneseq
    %v3206 = vshrl.u32 %v3205, 7
    %v3207 = vsub.s32 %v89, %v3206
    %v3208 = vrot.slane %v2995, %v3207
    %v3209 = vlaneseq
    %v3210 = vshrl.u32 %v3209, 7
    %v3211 = vsub.s32 %v89, %v3210
    %v3212 = vrot.slane %v2998, %v3211
    %v3213 = vlaneseq
    %v3214 = vshrl.u32 %v3213, 7
    %v3215 = vsub.s32 %v89, %v3214
    %v3216 = vrot.slane %v3001, %v3215
    %v3217 = vlaneseq
    %v3218 = vshrl.u32 %v3217, 7
    %v3219 = vsub.s32 %v89, %v3218
    %v3220 = vrot.slane %v3004, %v3219
    %v3221 = vlaneseq
    %v3222 = vshrl.u32 %v3221, 7
    %v3223 = vsub.s32 %v89, %v3222
    %v3224 = vrot.slane %v3007, %v3223
    %v3225 = vlaneseq
    %v3226 = vshrl.u32 %v3225, 7
    %v3227 = vsub.s32 %v89, %v3226
    %v3228 = vrot.slane %v3010, %v3227
    %v3229 = vlaneseq
    %v3230 = vshrl.u32 %v3229, 7
    %v3231 = vsub.s32 %v89, %v3230
    %v3232 = vrot.slane %v3013, %v3231
    %v3233 = vlaneseq
    %v3234 = vshrl.u32 %v3233, 7
    %v3235 = vsub.s32 %v89, %v3234
    %v3236 = vrot.slane %v3016, %v3235
    %v3237 = vlaneseq
    %v3238 = vshrl.u32 %v3237, 7
    %v3239 = vsub.s32 %v89, %v3238
    %v3240 = vrot.slane %v3019, %v3239
    %v3241 = vlaneseq
    %v3242 = vshrl.u32 %v3241, 7
    %v3243 = vsub.s32 %v89, %v3242
    %v3244 = vrot.slane %v3022, %v3243
    %v3245 = vlaneseq
    %v3246 = vshrl.u32 %v3245, 7
    %v3247 = vsub.s32 %v89, %v3246
    %v3248 = vrot.slane %v3025, %v3247
    %v3249 = vlaneseq
    %v3250 = vshrl.u32 %v3249, 7
    %v3251 = vsub.s32 %v89, %v3250
    %v3252 = vrot.slane %v3028, %v3251
    %v3253 = vlaneseq
    %v3254 = vshrl.u32 %v3253, 7
    %v3255 = vsub.s32 %v89, %v3254
    %v3256 = vrot.slane %v3031, %v3255
    %v3257 = vlaneseq
    %v3258 = vshrl.u32 %v3257, 7
    %v3259 = vsub.s32 %v89, %v3258
    %v3260 = vrot.slane %v3034, %v3259
    %v3261 = vlaneseq
    %v3262 = vshrl.u32 %v3261, 7
    %v3263 = vsub.s32 %v89, %v3262
    %v3264 = vrot.slane %v3037, %v3263
    %v3265 = vlaneseq
    %v3266 = vshrl.u32 %v3265, 7
    %v3267 = vsub.s32 %v89, %v3266
    %v3268 = vrot.slane %v3040, %v3267
    %v3269 = vlaneseq
    %v3270 = vshrl.u32 %v3269, 7
    %v3271 = vsub.s32 %v89, %v3270
    %v3272 = vrot.slane %v3043, %v3271
    %v3273 = vlaneseq
    %v3274 = vshrl.u32 %v3273, 7
    %v3275 = vsub.s32 %v89, %v3274
    %v3276 = vrot.slane %v3046, %v3275
    %v3277 = vlaneseq
    %v3278 = vshrl.u32 %v3277, 7
    %v3279 = vsub.s32 %v89, %v3278
    %v3280 = vrot.slane %v3049, %v3279
    %v3281 = vlaneseq
    %v3282 = vshrl.u32 %v3281, 7
    %v3283 = vsub.s32 %v89, %v3282
    %v3284 = vrot.slane %v3052, %v3283
    %v3285 = vlaneseq
    %v3286 = vshrl.u32 %v3285, 7
    %v3287 = vsub.s32 %v89, %v3286
    %v3288 = vrot.slane %v3055, %v3287
    %v3289 = vlaneseq
    %v3290 = vshrl.u32 %v3289, 7
    %v3291 = vsub.s32 %v89, %v3290
    %v3292 = vrot.slane %v3058, %v3291
    %v3293 = vlaneseq
    %v3294 = vshrl.u32 %v3293, 7
    %v3295 = vsub.s32 %v89, %v3294
    %v3296 = vrot.slane %v3061, %v3295
    %v3297 = vlaneseq
    %v3298 = vshrl.u32 %v3297, 7
    %v3299 = vsub.s32 %v89, %v3298
    %v3300 = vrot.slane %v3064, %v3299
    %v3301 = vlaneseq
    %v3302 = vshrl.u32 %v3301, 7
    %v3303 = vsub.s32 %v89, %v3302
    %v3304 = vrot.slane %v3067, %v3303
    %v3305 = vlaneseq
    %v3306 = vshrl.u32 %v3305, 7
    %v3307 = vsub.s32 %v89, %v3306
    %v3308 = vrot.slane %v3070, %v3307
    %v3309 = vlaneseq
    %v3310 = vshrl.u32 %v3309, 7
    %v3311 = vsub.s32 %v89, %v3310
    %v3312 = vrot.slane %v3073, %v3311
    %v3313 = vlaneseq
    %v3314 = vshrl.u32 %v3313, 7
    %v3315 = vsub.s32 %v89, %v3314
    %v3316 = vrot.slane %v3076, %v3315
    %v3317 = vlaneseq
    %v3318 = vshrl.u32 %v3317, 7
    %v3319 = vsub.s32 %v89, %v3318
    %v3320 = vrot.slane %v3079, %v3319
    %v3321 = vlaneseq
    %v3322 = vshrl.u32 %v3321, 7
    %v3323 = vsub.s32 %v89, %v3322
    %v3324 = vrot.slane %v3082, %v3323
    %v3325 = vlaneseq
    %v3326 = vshrl.u32 %v3325, 7
    %v3327 = vsub.s32 %v89, %v3326
    %v3328 = vrot.slane %v3085, %v3327
    %v3329 = vlaneseq
    %v3330 = vshrl.u32 %v3329, 7
    %v3331 = vsub.s32 %v89, %v3330
    %v3332 = vrot.slane %v3088, %v3331
    %v3333 = vlaneseq
    %v3334 = vshrl.u32 %v3333, 7
    %v3335 = vsub.s32 %v89, %v3334
    %v3336 = vrot.slane %v3091, %v3335
    %v3337 = vlaneseq
    %v3338 = vshrl.u32 %v3337, 7
    %v3339 = vsub.s32 %v89, %v3338
    %v3340 = vrot.slane %v3094, %v3339
    %v3341 = vlaneseq
    %v3342 = vshrl.u32 %v3341, 7
    %v3343 = vsub.s32 %v89, %v3342
    %v3344 = vrot.slane %v3097, %v3343
    %v3345 = vlaneseq
    %v3346 = vshrl.u32 %v3345, 7
    %v3347 = vsub.s32 %v89, %v3346
    %v3348 = vrot.slane %v3100, %v3347
    %v3349 = vlaneseq
    %v3350 = vshrl.u32 %v3349, 7
    %v3351 = vsub.s32 %v89, %v3350
    %v3352 = vrot.slane %v3103, %v3351
    %v3353 = vlaneseq
    %v3354 = vshrl.u32 %v3353, 7
    %v3355 = vsub.s32 %v89, %v3354
    %v3356 = vrot.slane %v3106, %v3355
    %v3357 = vlaneseq
    %v3358 = vshrl.u32 %v3357, 7
    %v3359 = vsub.s32 %v89, %v3358
    %v3360 = vrot.slane %v3109, %v3359
    %v3361 = vlaneseq
    %v3362 = vshrl.u32 %v3361, 7
    %v3363 = vsub.s32 %v89, %v3362
    %v3364 = vrot.slane %v3112, %v3363
    %v3365 = vlaneseq
    %v3366 = vshrl.u32 %v3365, 7
    %v3367 = vsub.s32 %v89, %v3366
    %v3368 = vrot.slane %v3115, %v3367
    %v3369 = vlaneseq
    %v3370 = vshrl.u32 %v3369, 7
    %v3371 = vsub.s32 %v89, %v3370
    %v3372 = vrot.slane %v3118, %v3371
    %v3373 = vlaneseq
    %v3374 = vshrl.u32 %v3373, 7
    %v3375 = vsub.s32 %v89, %v3374
    %v3376 = vrot.slane %v3121, %v3375
    %v3377 = vlaneseq
    %v3378 = vshrl.u32 %v3377, 7
    %v3379 = vsub.s32 %v89, %v3378
    %v3380 = vrot.slane %v3124, %v3379
    %v3381 = vsel %vm1380, %v3132, %v3128
    %v3382 = vsel %vm1382, %v3136, %v3381
    %v3383 = vsel %vm1384, %v3140, %v3382
    %v3384 = vsel %vm1386, %v3144, %v3383
    %v3385 = vsel %vm1388, %v3148, %v3384
    %v3386 = vsel %vm1390, %v3152, %v3385
    %v3387 = vsel %vm1392, %v3156, %v3386
    %v3388 = vsel %vm1380, %v3164, %v3160
    %v3389 = vsel %vm1382, %v3168, %v3388
    %v3390 = vsel %vm1384, %v3172, %v3389
    %v3391 = vsel %vm1386, %v3176, %v3390
    %v3392 = vsel %vm1388, %v3180, %v3391
    %v3393 = vsel %vm1390, %v3184, %v3392
    %v3394 = vsel %vm1392, %v3188, %v3393
    %v3395 = vsel %vm1380, %v3196, %v3192
    %v3396 = vsel %vm1382, %v3200, %v3395
    %v3397 = vsel %vm1384, %v3204, %v3396
    %v3398 = vsel %vm1386, %v3208, %v3397
    %v3399 = vsel %vm1388, %v3212, %v3398
    %v3400 = vsel %vm1390, %v3216, %v3399
    %v3401 = vsel %vm1392, %v3220, %v3400
    %v3402 = vsel %vm1380, %v3228, %v3224
    %v3403 = vsel %vm1382, %v3232, %v3402
    %v3404 = vsel %vm1384, %v3236, %v3403
    %v3405 = vsel %vm1386, %v3240, %v3404
    %v3406 = vsel %vm1388, %v3244, %v3405
    %v3407 = vsel %vm1390, %v3248, %v3406
    %v3408 = vsel %vm1392, %v3252, %v3407
    %v3409 = vsel %vm1380, %v3260, %v3256
    %v3410 = vsel %vm1382, %v3264, %v3409
    %v3411 = vsel %vm1384, %v3268, %v3410
    %v3412 = vsel %vm1386, %v3272, %v3411
    %v3413 = vsel %vm1388, %v3276, %v3412
    %v3414 = vsel %vm1390, %v3280, %v3413
    %v3415 = vsel %vm1392, %v3284, %v3414
    %v3416 = vsel %vm1380, %v3292, %v3288
    %v3417 = vsel %vm1382, %v3296, %v3416
    %v3418 = vsel %vm1384, %v3300, %v3417
    %v3419 = vsel %vm1386, %v3304, %v3418
    %v3420 = vsel %vm1388, %v3308, %v3419
    %v3421 = vsel %vm1390, %v3312, %v3420
    %v3422 = vsel %vm1392, %v3316, %v3421
    %v3423 = vsel %vm1380, %v3324, %v3320
    %v3424 = vsel %vm1382, %v3328, %v3423
    %v3425 = vsel %vm1384, %v3332, %v3424
    %v3426 = vsel %vm1386, %v3336, %v3425
    %v3427 = vsel %vm1388, %v3340, %v3426
    %v3428 = vsel %vm1390, %v3344, %v3427
    %v3429 = vsel %vm1392, %v3348, %v3428
    %v3430 = vsel %vm1380, %v3356, %v3352
    %v3431 = vsel %vm1382, %v3360, %v3430
    %v3432 = vsel %vm1384, %v3364, %v3431
    %v3433 = vsel %vm1386, %v3368, %v3432
    %v3434 = vsel %vm1388, %v3372, %v3433
    %v3435 = vsel %vm1390, %v3376, %v3434
    %v3436 = vsel %vm1392, %v3380, %v3435
    %v3445 = vsel %vm101, %v3387, 0.0
    %3446 = vadd.xlane.f32.xlu0 %v3445
    %v3447 = vpop.xlane.xlu0 %3446
    %v3448 = vsel %vm101, %v3394, 0.0
    %3449 = vadd.xlane.f32.xlu0 %v3448
    %v3450 = vpop.xlane.xlu0 %3449
    %v3451 = vsel %vm101, %v3401, 0.0
    %3452 = vadd.xlane.f32.xlu0 %v3451
    %v3453 = vpop.xlane.xlu0 %3452
    %v3454 = vsel %vm101, %v3408, 0.0
    %3455 = vadd.xlane.f32.xlu0 %v3454
    %v3456 = vpop.xlane.xlu0 %3455
    %v3457 = vsel %vm101, %v3415, 0.0
    %3458 = vadd.xlane.f32.xlu0 %v3457
    %v3459 = vpop.xlane.xlu0 %3458
    %v3460 = vsel %vm101, %v3422, 0.0
    %3461 = vadd.xlane.f32.xlu0 %v3460
    %v3462 = vpop.xlane.xlu0 %3461
    %v3463 = vsel %vm101, %v3429, 0.0
    %3464 = vadd.xlane.f32.xlu0 %v3463
    %v3465 = vpop.xlane.xlu0 %3464
    %v3466 = vsel %vm101, %v3436, 0.0
    %3467 = vadd.xlane.f32.xlu0 %v3466
    %v3468 = vpop.xlane.xlu0 %3467
    %v3469 = vlaneseq
    %v3470 = vshrl.u32 %v3469, 7
    %v3471 = vsub.s32 0, %v3470
    %v3472 = vrot.slane %v68, %v3471
    %3474 = vbcast.lane.b32.xlu0 %v3472, 256
    %v3475 = vpop.permute.xlu0 %3474
    %v3476 = vlaneseq
    %v3477 = vshrl.u32 %v3476, 7
    %v3478 = vsub.s32 1, %v3477
    %v3479 = vrot.slane %v68, %v3478
    %3481 = vbcast.lane.b32.xlu0 %v3479, 256
    %v3482 = vpop.permute.xlu0 %3481
    %v3483 = vlaneseq
    %v3484 = vshrl.u32 %v3483, 7
    %v3485 = vsub.s32 2, %v3484
    %v3486 = vrot.slane %v68, %v3485
    %3488 = vbcast.lane.b32.xlu0 %v3486, 256
    %v3489 = vpop.permute.xlu0 %3488
    %v3490 = vlaneseq
    %v3491 = vshrl.u32 %v3490, 7
    %v3492 = vsub.s32 3, %v3491
    %v3493 = vrot.slane %v68, %v3492
    %3495 = vbcast.lane.b32.xlu0 %v3493, 256
    %v3496 = vpop.permute.xlu0 %3495
    %v3497 = vlaneseq
    %v3498 = vshrl.u32 %v3497, 7
    %v3499 = vsub.s32 4, %v3498
    %v3500 = vrot.slane %v68, %v3499
    %3502 = vbcast.lane.b32.xlu0 %v3500, 256
    %v3503 = vpop.permute.xlu0 %3502
    %v3504 = vlaneseq
    %v3505 = vshrl.u32 %v3504, 7
    %v3506 = vsub.s32 5, %v3505
    %v3507 = vrot.slane %v68, %v3506
    %3509 = vbcast.lane.b32.xlu0 %v3507, 256
    %v3510 = vpop.permute.xlu0 %3509
    %v3511 = vlaneseq
    %v3512 = vshrl.u32 %v3511, 7
    %v3513 = vsub.s32 6, %v3512
    %v3514 = vrot.slane %v68, %v3513
    %3516 = vbcast.lane.b32.xlu0 %v3514, 256
    %v3517 = vpop.permute.xlu0 %3516
    %v3518 = vlaneseq
    %v3519 = vshrl.u32 %v3518, 7
    %v3520 = vsub.s32 7, %v3519
    %v3521 = vrot.slane %v68, %v3520
    %3523 = vbcast.lane.b32.xlu0 %v3521, 256
    %v3524 = vpop.permute.xlu0 %3523
    %v3533 = vadd.f32 %v3447, %v3475
    %v3534 = vadd.f32 %v3450, %v3482
    %v3535 = vadd.f32 %v3453, %v3489
    %v3536 = vadd.f32 %v3456, %v3496
    %v3537 = vadd.f32 %v3459, %v3503
    %v3538 = vadd.f32 %v3462, %v3510
    %v3539 = vadd.f32 %v3465, %v3517
    %v3540 = vadd.f32 %v3468, %v3524
    %v3541 = vmul.f32 %v1548, %v1548
    %v3542 = vmul.f32 %v1549, %v1549
    %v3543 = vmul.f32 %v1550, %v1550
    %v3544 = vmul.f32 %v1551, %v1551
    %v3545 = vmul.f32 %v1552, %v1552
    %v3546 = vmul.f32 %v1553, %v1553
    %v3547 = vmul.f32 %v1554, %v1554
    %v3548 = vmul.f32 %v1555, %v1555
    %v3549 = vsub.f32 1.0, %v3541
    %v3550 = vsub.f32 1.0, %v3542
    %v3551 = vsub.f32 1.0, %v3543
    %v3552 = vsub.f32 1.0, %v3544
    %v3553 = vsub.f32 1.0, %v3545
    %v3554 = vsub.f32 1.0, %v3546
    %v3555 = vsub.f32 1.0, %v3547
    %v3556 = vsub.f32 1.0, %v3548
    %v3557 = vmul.f32 %v3549, %v104
    %v3558 = vmul.f32 %v3550, %v107
    %v3559 = vmul.f32 %v3551, %v110
    %v3560 = vmul.f32 %v3552, %v113
    %v3561 = vmul.f32 %v3553, %v116
    %v3562 = vmul.f32 %v3554, %v119
    %v3563 = vmul.f32 %v3555, %v122
    %v3564 = vmul.f32 %v3556, %v125
    %v3565 = vmul.f32 %v3557, %v136
    %v3566 = vmul.f32 %v3558, %v139
    %v3567 = vmul.f32 %v3559, %v142
    %v3568 = vmul.f32 %v3560, %v145
    %v3569 = vmul.f32 %v3561, %v148
    %v3570 = vmul.f32 %v3562, %v151
    %v3571 = vmul.f32 %v3563, %v154
    %v3572 = vmul.f32 %v3564, %v157
    %v3573 = vadd.f32 %v3565, 1.0
    %v3574 = vadd.f32 %v3566, 1.0
    %v3575 = vadd.f32 %v3567, 1.0
    %v3576 = vadd.f32 %v3568, 1.0
    %v3577 = vadd.f32 %v3569, 1.0
    %v3578 = vadd.f32 %v3570, 1.0
    %v3579 = vadd.f32 %v3571, 1.0
    %v3580 = vadd.f32 %v3572, 1.0
    %v3581 = vand.u32 2147483647, %v3573
    %v3582 = vand.u32 2147483647, %v3574
    %v3583 = vand.u32 2147483647, %v3575
    %v3584 = vand.u32 2147483647, %v3576
    %v3585 = vand.u32 2147483647, %v3577
    %v3586 = vand.u32 2147483647, %v3578
    %v3587 = vand.u32 2147483647, %v3579
    %v3588 = vand.u32 2147483647, %v3580
    %v3589 = vlog2.pop %v3581
    %v3590 = vmul.f32 %v3589, 0.6931472
    %v3591 = vlog2.pop %v3582
    %v3592 = vmul.f32 %v3591, 0.6931472
    %v3593 = vlog2.pop %v3583
    %v3594 = vmul.f32 %v3593, 0.6931472
    %v3595 = vlog2.pop %v3584
    %v3596 = vmul.f32 %v3595, 0.6931472
    %v3597 = vlog2.pop %v3585
    %v3598 = vmul.f32 %v3597, 0.6931472
    %v3599 = vlog2.pop %v3586
    %v3600 = vmul.f32 %v3599, 0.6931472
    %v3601 = vlog2.pop %v3587
    %v3602 = vmul.f32 %v3601, 0.6931472
    %v3603 = vlog2.pop %v3588
    %v3604 = vmul.f32 %v3603, 0.6931472
    %3613 = vset.pattern.permute.xlu0 0
    %3614 = vperm.xlu0 %3613, %v3590
    %v3615 = vpop.permute.xlu0 %3614
    %3616 = vset.pattern.permute.xlu0 0
    %3617 = vperm.xlu0 %3616, %v3592
    %v3618 = vpop.permute.xlu0 %3617
    %3619 = vset.pattern.permute.xlu0 0
    %3620 = vperm.xlu0 %3619, %v3594
    %v3621 = vpop.permute.xlu0 %3620
    %3622 = vset.pattern.permute.xlu0 0
    %3623 = vperm.xlu0 %3622, %v3596
    %v3624 = vpop.permute.xlu0 %3623
    %3625 = vset.pattern.permute.xlu0 0
    %3626 = vperm.xlu0 %3625, %v3598
    %v3627 = vpop.permute.xlu0 %3626
    %3628 = vset.pattern.permute.xlu0 0
    %3629 = vperm.xlu0 %3628, %v3600
    %v3630 = vpop.permute.xlu0 %3629
    %3631 = vset.pattern.permute.xlu0 0
    %3632 = vperm.xlu0 %3631, %v3602
    %v3633 = vpop.permute.xlu0 %3632
    %3634 = vset.pattern.permute.xlu0 0
    %3635 = vperm.xlu0 %3634, %v3604
    %v3636 = vpop.permute.xlu0 %3635
    %v3637 = vlaneseq
    %v3638 = vshrl.u32 %v3637, 7
    %v3639 = vsub.s32 %v89, %v3638
    %v3640 = vrot.slane %v3615, %v3639
    %v3641 = vlaneseq
    %v3642 = vshrl.u32 %v3641, 7
    %v3643 = vsub.s32 %v89, %v3642
    %v3644 = vrot.slane %v3618, %v3643
    %v3645 = vlaneseq
    %v3646 = vshrl.u32 %v3645, 7
    %v3647 = vsub.s32 %v89, %v3646
    %v3648 = vrot.slane %v3621, %v3647
    %v3649 = vlaneseq
    %v3650 = vshrl.u32 %v3649, 7
    %v3651 = vsub.s32 %v89, %v3650
    %v3652 = vrot.slane %v3624, %v3651
    %v3653 = vlaneseq
    %v3654 = vshrl.u32 %v3653, 7
    %v3655 = vsub.s32 %v89, %v3654
    %v3656 = vrot.slane %v3627, %v3655
    %v3657 = vlaneseq
    %v3658 = vshrl.u32 %v3657, 7
    %v3659 = vsub.s32 %v89, %v3658
    %v3660 = vrot.slane %v3630, %v3659
    %v3661 = vlaneseq
    %v3662 = vshrl.u32 %v3661, 7
    %v3663 = vsub.s32 %v89, %v3662
    %v3664 = vrot.slane %v3633, %v3663
    %v3665 = vlaneseq
    %v3666 = vshrl.u32 %v3665, 7
    %v3667 = vsub.s32 %v89, %v3666
    %v3668 = vrot.slane %v3636, %v3667
    %v3669 = vsel %vm1380, %v3644, %v3640
    %v3670 = vsel %vm1382, %v3648, %v3669
    %v3671 = vsel %vm1384, %v3652, %v3670
    %v3672 = vsel %vm1386, %v3656, %v3671
    %v3673 = vsel %vm1388, %v3660, %v3672
    %v3674 = vsel %vm1390, %v3664, %v3673
    %v3675 = vsel %vm1392, %v3668, %v3674
    %v3677 = vsel %vm101, %v3675, 0.0
    %3678 = vadd.xlane.f32.xlu0 %v3677
    %v3679 = vpop.xlane.xlu0 %3678
    %3688 = vset.pattern.permute.xlu0 0
    %3689 = vperm.xlu0 %3688, %v3533
    %v3690 = vpop.permute.xlu0 %3689
    %3691 = vset.pattern.permute.xlu0 0
    %3692 = vperm.xlu0 %3691, %v3534
    %v3693 = vpop.permute.xlu0 %3692
    %3694 = vset.pattern.permute.xlu0 0
    %3695 = vperm.xlu0 %3694, %v3535
    %v3696 = vpop.permute.xlu0 %3695
    %3697 = vset.pattern.permute.xlu0 0
    %3698 = vperm.xlu0 %3697, %v3536
    %v3699 = vpop.permute.xlu0 %3698
    %3700 = vset.pattern.permute.xlu0 0
    %3701 = vperm.xlu0 %3700, %v3537
    %v3702 = vpop.permute.xlu0 %3701
    %3703 = vset.pattern.permute.xlu0 0
    %3704 = vperm.xlu0 %3703, %v3538
    %v3705 = vpop.permute.xlu0 %3704
    %3706 = vset.pattern.permute.xlu0 0
    %3707 = vperm.xlu0 %3706, %v3539
    %v3708 = vpop.permute.xlu0 %3707
    %3709 = vset.pattern.permute.xlu0 0
    %3710 = vperm.xlu0 %3709, %v3540
    %v3711 = vpop.permute.xlu0 %3710
    %v3712 = vlaneseq
    %v3713 = vshrl.u32 %v3712, 7
    %v3714 = vsub.s32 %v89, %v3713
    %v3715 = vrot.slane %v3690, %v3714
    %v3716 = vlaneseq
    %v3717 = vshrl.u32 %v3716, 7
    %v3718 = vsub.s32 %v89, %v3717
    %v3719 = vrot.slane %v3693, %v3718
    %v3720 = vlaneseq
    %v3721 = vshrl.u32 %v3720, 7
    %v3722 = vsub.s32 %v89, %v3721
    %v3723 = vrot.slane %v3696, %v3722
    %v3724 = vlaneseq
    %v3725 = vshrl.u32 %v3724, 7
    %v3726 = vsub.s32 %v89, %v3725
    %v3727 = vrot.slane %v3699, %v3726
    %v3728 = vlaneseq
    %v3729 = vshrl.u32 %v3728, 7
    %v3730 = vsub.s32 %v89, %v3729
    %v3731 = vrot.slane %v3702, %v3730
    %v3732 = vlaneseq
    %v3733 = vshrl.u32 %v3732, 7
    %v3734 = vsub.s32 %v89, %v3733
    %v3735 = vrot.slane %v3705, %v3734
    %v3736 = vlaneseq
    %v3737 = vshrl.u32 %v3736, 7
    %v3738 = vsub.s32 %v89, %v3737
    %v3739 = vrot.slane %v3708, %v3738
    %v3740 = vlaneseq
    %v3741 = vshrl.u32 %v3740, 7
    %v3742 = vsub.s32 %v89, %v3741
    %v3743 = vrot.slane %v3711, %v3742
    %v3744 = vsel %vm1380, %v3719, %v3715
    %v3745 = vsel %vm1382, %v3723, %v3744
    %v3746 = vsel %vm1384, %v3727, %v3745
    %v3747 = vsel %vm1386, %v3731, %v3746
    %v3748 = vsel %vm1388, %v3735, %v3747
    %v3749 = vsel %vm1390, %v3739, %v3748
    %v3750 = vsel %vm1392, %v3743, %v3749
    %3752 = vst.msk [vmem:[%s4] sm:$0xff] %vm101, %v3750
    %v3753 = vadd.s32 %v89, 4294967288
    %v3754 = vlaneseq
    %v3755 = vshrl.u32 %v3754, 7
    %v3756 = vsub.s32 %v3753, %v3755
    %v3757 = vrot.slane %v3615, %v3756
    %v3758 = vlaneseq
    %v3759 = vshrl.u32 %v3758, 7
    %v3760 = vsub.s32 %v3753, %v3759
    %v3761 = vrot.slane %v3618, %v3760
    %v3762 = vlaneseq
    %v3763 = vshrl.u32 %v3762, 7
    %v3764 = vsub.s32 %v3753, %v3763
    %v3765 = vrot.slane %v3621, %v3764
    %v3766 = vlaneseq
    %v3767 = vshrl.u32 %v3766, 7
    %v3768 = vsub.s32 %v3753, %v3767
    %v3769 = vrot.slane %v3624, %v3768
    %v3770 = vlaneseq
    %v3771 = vshrl.u32 %v3770, 7
    %v3772 = vsub.s32 %v3753, %v3771
    %v3773 = vrot.slane %v3627, %v3772
    %v3774 = vlaneseq
    %v3775 = vshrl.u32 %v3774, 7
    %v3776 = vsub.s32 %v3753, %v3775
    %v3777 = vrot.slane %v3630, %v3776
    %v3778 = vlaneseq
    %v3779 = vshrl.u32 %v3778, 7
    %v3780 = vsub.s32 %v3753, %v3779
    %v3781 = vrot.slane %v3633, %v3780
    %v3782 = vlaneseq
    %v3783 = vshrl.u32 %v3782, 7
    %v3784 = vsub.s32 %v3753, %v3783
    %v3785 = vrot.slane %v3636, %v3784
    %v3786 = vsel %vm1380, %v3761, %v3757
    %v3787 = vsel %vm1382, %v3765, %v3786
    %v3788 = vsel %vm1384, %v3769, %v3787
    %v3789 = vsel %vm1386, %v3773, %v3788
    %v3790 = vsel %vm1388, %v3777, %v3789
    %v3791 = vsel %vm1390, %v3781, %v3790
    %v3792 = vsel %vm1392, %v3785, %v3791
    %vm3794 = vcmask 130112
    %3795 = vst.msk [vmem:[%s4] sm:$0xff] %vm3794, %v3792
    %vm3796 = vcmask 195712
    %3797 = vst.msk [vmem:[%s4] sm:$0xff] %vm3796, %v3679
    // Predicated region
    $region34: #{triangular_sylvester_forward.1} parent=1 // pred_check
      _
    $region35: #{triangular_sylvester_forward.1} parent=1 // pred_check_branch
      %3799 = sbr.rel (0) target = $region37
    $region36: #{triangular_sylvester_forward.1} parent=1 // pred_region
      _
    $region37: #{triangular_sylvester_forward.1} parent=1 // pred_fallthru
      _
    // Predicated region
    $region38: #{triangular_sylvester_forward.1} parent=1 // pred_check
      _
    $region39: #{triangular_sylvester_forward.1} parent=1 // pred_check_branch
      %3801 = sbr.rel (0) target = $region41
    $region40: #{triangular_sylvester_forward.1} parent=1 // pred_region
      _
    $region41: #{triangular_sylvester_forward.1} parent=1 // pred_fallthru
      _
    %3802 = vsyncpa [#allocation3], 1
    %3803 = vsyncpa [#allocation5], 1
    %3804 = vsyncpa [#allocation8], 1

</llo_original>
